<compile_context>
chip_gen: v6e
topology: v6e:2x2x1
jax: 0.10.0
libtpu: 0.0.40
codegen_flags: <defaults>
</compile_context>

<pallas_src>
import functools

import jax
import jax.numpy as jnp
from jax.experimental import pallas as pl
from jax.experimental.pallas import tpu as pltpu


# 3x3 taps in row-major (ky, kx) order; must match the w2m column layout and the masks.
_TAPS = tuple((dy, dx) for dy in (-1, 0, 1) for dx in (-1, 0, 1))


# --------------------------------------------------------------------------- kernel

def _bottleneck_kernel(x_ref, masks_ref, s1_ref, b1_ref, w1t_ref,
                       s2_ref, b2_ref, w2m_ref, o_ref, pad_ref,
                       *, H, W, growth):
    HW = H * W
    off = W + 1

    x = x_ref[0]                                                       # (Cin, HW)
    cin = x.shape[0]

    # ---- BN1 (folded scale/bias) + ReLU + 1x1 conv on the MXU ----------------
    a = jnp.maximum(x * s1_ref[...] + b1_ref[...], 0.0)                # (Cin, HW)
    h = jnp.dot(w1t_ref[...], a, preferred_element_type=jnp.float32)   # (4g, HW)

    # ---- BN2 + ReLU -----------------------------------------------------------
    h = jnp.maximum(h * s2_ref[...] + b2_ref[...], 0.0)                # (4g, HW)

    # ---- 3x3 conv (stride 1, pad 1) via in-VMEM im2col ------------------------
    # Flat zero-margin buffer: pad[:, off + q] = h[:, q]; margins stay zero so taps
    # that fall off the top/bottom rows read zeros.  Left/right wraps are killed by
    # the per-tap masks.
    pad_ref[...] = jnp.zeros_like(pad_ref)
    pad_ref[:, off:off + HW] = h

    pieces = []
    for k, (dy, dx) in enumerate(_TAPS):
        if dy == 0 and dx == 0:
            pieces.append(h)
        else:
            s = dy * W + dx
            win = pad_ref[:, off + s:off + s + HW]                     # (4g, HW)
            pieces.append(win * masks_ref[k:k + 1, :])
    patches = jnp.concatenate(pieces, axis=0)                          # (9*4g, HW)

    conv = jnp.dot(w2m_ref[...], patches,
                   preferred_element_type=jnp.float32)                 # (g, HW)

    # ---- dropout(p=0.2) is identity in eval mode; channel concat --------------
    o_ref[0, 0:growth, :] = conv
    o_ref[0, growth:growth + cin, :] = x


# --------------------------------------------------------------------------- wrapper

def _make_masks(H, W):
    """(9, H*W) f32 validity masks for the 9 taps of a 3x3 'same' convolution."""
    ys = jnp.repeat(jnp.arange(H), W).reshape(1, H * W)
    xs = jnp.tile(jnp.arange(W), H).reshape(1, H * W)
    rows = []
    for dy, dx in _TAPS:
        ok = ((ys + dy >= 0) & (ys + dy < H) & (xs + dx >= 0) & (xs + dx < W))
        rows.append(ok.astype(jnp.float32))
    return jnp.concatenate(rows, axis=0)


def bottleneck_forward(params, x_nchw):
    """Fused Bottleneck forward.  x_nchw: (N, Cin, H, W) -> (N, growth+Cin, H, W)."""
    n, cin, h, w = x_nchw.shape
    hw = h * w
    growth = params['w2m'].shape[0]
    c4 = params['s2'].shape[0]
    cout = cin + growth

    x = x_nchw.reshape(n, cin, hw).astype(jnp.float32)   # channel-major flat layout
    masks = _make_masks(h, w)

    kernel = functools.partial(_bottleneck_kernel, H=h, W=w, growth=growth)

    out = pl.pallas_call(
        kernel,
        grid=(n,),
        in_specs=[
            pl.BlockSpec((1, cin, hw), lambda i: (i, 0, 0)),      # x
            pl.BlockSpec((9, hw), lambda i: (0, 0)),              # masks
            pl.BlockSpec((cin, 1), lambda i: (0, 0)),             # s1
            pl.BlockSpec((cin, 1), lambda i: (0, 0)),             # b1
            pl.BlockSpec((c4, cin), lambda i: (0, 0)),            # w1 (4g, Cin)
            pl.BlockSpec((c4, 1), lambda i: (0, 0)),              # s2
            pl.BlockSpec((c4, 1), lambda i: (0, 0)),              # b2
            pl.BlockSpec((growth, 9 * c4), lambda i: (0, 0)),     # w2 (g, 9*4g)
        ],
        out_specs=pl.BlockSpec((1, cout, hw), lambda i: (i, 0, 0)),
        out_shape=jax.ShapeDtypeStruct((n, cout, hw), jnp.float32),
        scratch_shapes=[pltpu.VMEM((c4, hw + 2 * (w + 1)), jnp.float32)],
        compiler_params=pltpu.CompilerParams(
            dimension_semantics=("parallel",),
            vmem_limit_bytes=32 * 1024 * 1024),
    )(x, masks,
      params['s1'].reshape(cin, 1), params['b1'].reshape(cin, 1),
      params['w1t'],
      params['s2'].reshape(c4, 1), params['b2'].reshape(c4, 1),
      params['w2m'])

    return out.reshape(n, cout, h, w)


# --------------------------------------------------------------------------- params

def init_torch_params(key, in_planes, growth_rate):
    """Random parameters in PyTorch layouts (eval-mode BatchNorm running stats)."""
    g = growth_rate
    ks = jax.random.split(key, 10)
    return dict(
        bn1_gamma=1.0 + 0.1 * jax.random.normal(ks[0], (in_planes,), jnp.float32),
        bn1_beta=0.1 * jax.random.normal(ks[1], (in_planes,), jnp.float32),
        bn1_mean=0.1 * jax.random.normal(ks[2], (in_planes,), jnp.float32),
        bn1_var=1.0 + 0.1 * jax.random.uniform(ks[3], (in_planes,), jnp.float32),
        conv1_w=0.1 * jax.random.normal(ks[4], (4 * g, in_planes, 1, 1), jnp.float32),
        bn2_gamma=1.0 + 0.1 * jax.random.normal(ks[5], (4 * g,), jnp.float32),
        bn2_beta=0.1 * jax.random.normal(ks[6], (4 * g,), jnp.float32),
        bn2_mean=0.1 * jax.random.normal(ks[7], (4 * g,), jnp.float32),
        bn2_var=1.0 + 0.1 * jax.random.uniform(ks[8], (4 * g,), jnp.float32),
        conv2_w=0.1 * jax.random.normal(ks[9], (g, 4 * g, 3, 3), jnp.float32),
    )


def prepare_params(tp, eps=1e-5):
    """Fold BN running stats into scale/bias and reshape conv weights for the kernel."""
    s1 = tp['bn1_gamma'] / jnp.sqrt(tp['bn1_var'] + eps)
    b1 = tp['bn1_beta'] - tp['bn1_mean'] * s1
    s2 = tp['bn2_gamma'] / jnp.sqrt(tp['bn2_var'] + eps)
    b2 = tp['bn2_beta'] - tp['bn2_mean'] * s2
    w1t = tp['conv1_w'][:, :, 0, 0]                                    # (4g, Cin)
    g, c4 = tp['conv2_w'].shape[:2]
    # torch (o, c, ky, kx) -> (o, ky, kx, c) -> (g, 9*4g); column = (ky*3+kx)*4g + c
    w2m = jnp.transpose(tp['conv2_w'], (0, 2, 3, 1)).reshape(g, 9 * c4)
    return dict(s1=s1, b1=b1, w1t=w1t, s2=s2, b2=b2, w2m=w2m)


# --------------------------------------------------------------------------- reference

def bottleneck_reference(tp, x, eps=1e-5):
    """Pure-JAX eval-mode reference matching the PyTorch module."""
    def bn(h, gamma, beta, mean, var):
        inv = gamma / jnp.sqrt(var + eps)
        return h * inv[None, :, None, None] + (beta - mean * inv)[None, :, None, None]

    h = jax.nn.relu(bn(x, tp['bn1_gamma'], tp['bn1_beta'], tp['bn1_mean'], tp['bn1_var']))
    h = jax.lax.conv_general_dilated(
        h, tp['conv1_w'], window_strides=(1, 1), padding='VALID',
        dimension_numbers=('NCHW', 'OIHW', 'NCHW'),
        precision=jax.lax.Precision.HIGHEST)
    h = jax.nn.relu(bn(h, tp['bn2_gamma'], tp['bn2_beta'], tp['bn2_mean'], tp['bn2_var']))
    h = jax.lax.conv_general_dilated(
        h, tp['conv2_w'], window_strides=(1, 1), padding=((1, 1), (1, 1)),
        dimension_numbers=('NCHW', 'OIHW', 'NCHW'),
        precision=jax.lax.Precision.HIGHEST)
    # dropout(p=0.2) is identity in eval mode
    return jnp.concatenate([h, x], axis=1)


# --------------------------------------------------------------------------- main

if __name__ == "__main__":
    key = jax.random.PRNGKey(0)
    in_planes, growth_rate = 24, 12
    N, H, W = 2, 16, 16

    tparams = init_torch_params(key, in_planes, growth_rate)
    kparams = prepare_params(tparams)
    x = jax.random.normal(jax.random.fold_in(key, 1234),
                          (N, in_planes, H, W), jnp.float32)

    fwd = jax.jit(bottleneck_forward)
    out = jax.block_until_ready(fwd(kparams, x))

    assert out.shape == (N, growth_rate + in_planes, H, W), out.shape
    assert bool(jnp.all(jnp.isfinite(out)))

    ref = jax.block_until_ready(jax.jit(bottleneck_reference)(tparams, x))
    max_err = float(jnp.max(jnp.abs(out - ref)))
    assert max_err < 2e-3, max_err

    print("KERNEL_OK")
</pallas_src>

<mosaic_0001>
module attributes {stable_mosaic.version = 11 : i64} {
  func.func @_bottleneck_kernel(%arg0: i32, %arg1: memref<1x24x256xf32, #tpu.memory_space<vmem>>, %arg2: memref<9x256xf32, #tpu.memory_space<vmem>>, %arg3: memref<24x1xf32, #tpu.memory_space<vmem>>, %arg4: memref<24x1xf32, #tpu.memory_space<vmem>>, %arg5: memref<48x24xf32, #tpu.memory_space<vmem>>, %arg6: memref<48x1xf32, #tpu.memory_space<vmem>>, %arg7: memref<48x1xf32, #tpu.memory_space<vmem>>, %arg8: memref<12x432xf32, #tpu.memory_space<vmem>>, %arg9: memref<1x36x256xf32, #tpu.memory_space<vmem>>, %arg10: memref<48x290xf32, #tpu.memory_space<vmem>>) attributes {dimension_semantics = [#tpu.dimension_semantics<parallel>], iteration_bounds = array<i64: 2>, scalar_prefetch = 0 : i64, scratch_operands = 1 : i64, tpu.core_type = #tpu.core_type<tc>, window_params = [{transform_indices = @transform_0, window_bounds = array<i64: 1, 24, 256>}, {pipeline_mode = #tpu.pipeline_mode<synchronous>, transform_indices = @transform_1, window_bounds = array<i64: 9, 256>}, {pipeline_mode = #tpu.pipeline_mode<synchronous>, transform_indices = @transform_2, window_bounds = array<i64: 24, 1>}, {pipeline_mode = #tpu.pipeline_mode<synchronous>, transform_indices = @transform_3, window_bounds = array<i64: 24, 1>}, {pipeline_mode = #tpu.pipeline_mode<synchronous>, transform_indices = @transform_4, window_bounds = array<i64: 48, 24>}, {pipeline_mode = #tpu.pipeline_mode<synchronous>, transform_indices = @transform_5, window_bounds = array<i64: 48, 1>}, {pipeline_mode = #tpu.pipeline_mode<synchronous>, transform_indices = @transform_6, window_bounds = array<i64: 48, 1>}, {pipeline_mode = #tpu.pipeline_mode<synchronous>, transform_indices = @transform_7, window_bounds = array<i64: 12, 432>}, {transform_indices = @transform_8, window_bounds = array<i64: 1, 36, 256>}]} {
    %c0 = arith.constant 0 : index
    %c0_0 = arith.constant 0 : index
    %c0_1 = arith.constant 0 : index
    %0 = vector.load %arg1[%c0, %c0_0, %c0_1] : memref<1x24x256xf32, #tpu.memory_space<vmem>>, vector<1x24x256xf32>
    %1 = vector.shape_cast %0 : vector<1x24x256xf32> to vector<24x256xf32>
    %c0_2 = arith.constant 0 : index
    %c0_3 = arith.constant 0 : index
    %2 = vector.load %arg3[%c0_2, %c0_3] : memref<24x1xf32, #tpu.memory_space<vmem>>, vector<24x1xf32>
    %3 = vector.broadcast %2 : vector<24x1xf32> to vector<24x256xf32>
    %4 = arith.mulf %1, %3 : vector<24x256xf32>
    %c0_4 = arith.constant 0 : index
    %c0_5 = arith.constant 0 : index
    %5 = vector.load %arg4[%c0_4, %c0_5] : memref<24x1xf32, #tpu.memory_space<vmem>>, vector<24x1xf32>
    %6 = vector.broadcast %5 : vector<24x1xf32> to vector<24x256xf32>
    %7 = arith.addf %4, %6 : vector<24x256xf32>
    %cst = arith.constant 0.000000e+00 : f32
    %8 = vector.broadcast %cst : f32 to vector<24x256xf32>
    %9 = arith.maximumf %7, %8 : vector<24x256xf32>
    %c0_6 = arith.constant 0 : index
    %c0_7 = arith.constant 0 : index
    %10 = vector.load %arg5[%c0_6, %c0_7] : memref<48x24xf32, #tpu.memory_space<vmem>>, vector<48x24xf32>
    %cst_8 = arith.constant dense<0.000000e+00> : vector<48x256xf32>
    %11 = tpu.matmul %10, %9, %cst_8 {dimension_numbers = #tpu.dot_dimension_numbers<[1], [0], [0], [1], [0, 0, 1, 1], [], []>} : vector<48x24xf32>, vector<24x256xf32>, vector<48x256xf32> -> vector<48x256xf32>
    %c0_9 = arith.constant 0 : index
    %c0_10 = arith.constant 0 : index
    %12 = vector.load %arg6[%c0_9, %c0_10] : memref<48x1xf32, #tpu.memory_space<vmem>>, vector<48x1xf32>
    %13 = vector.broadcast %12 : vector<48x1xf32> to vector<48x256xf32>
    %14 = arith.mulf %11, %13 : vector<48x256xf32>
    %c0_11 = arith.constant 0 : index
    %c0_12 = arith.constant 0 : index
    %15 = vector.load %arg7[%c0_11, %c0_12] : memref<48x1xf32, #tpu.memory_space<vmem>>, vector<48x1xf32>
    %16 = vector.broadcast %15 : vector<48x1xf32> to vector<48x256xf32>
    %17 = arith.addf %14, %16 : vector<48x256xf32>
    %cst_13 = arith.constant 0.000000e+00 : f32
    %18 = vector.broadcast %cst_13 : f32 to vector<48x256xf32>
    %19 = arith.maximumf %17, %18 : vector<48x256xf32>
    %cst_14 = arith.constant 0.000000e+00 : f32
    %20 = vector.broadcast %cst_14 : f32 to vector<48x290xf32>
    %c0_15 = arith.constant 0 : index
    %c0_16 = arith.constant 0 : index
    %21 = vector.load %arg10[%c0_15, %c0_16] : memref<48x290xf32, #tpu.memory_space<vmem>>, vector<48x290xf32>
    tpu.vector_store %arg10[%c0_15, %c0_16], %20 {strides = array<i32>} : memref<48x290xf32, #tpu.memory_space<vmem>>, vector<48x290xf32>,
    %c0_17 = arith.constant 0 : index
    %c17 = arith.constant 17 : index
    %22 = vector.load %arg10[%c0_17, %c17] : memref<48x290xf32, #tpu.memory_space<vmem>>, vector<48x256xf32>
    tpu.vector_store %arg10[%c0_17, %c17], %19 {strides = array<i32>} : memref<48x290xf32, #tpu.memory_space<vmem>>, vector<48x256xf32>,
    %c0_18 = arith.constant 0 : index
    %c0_19 = arith.constant 0 : index
    %23 = vector.load %arg10[%c0_18, %c0_19] : memref<48x290xf32, #tpu.memory_space<vmem>>, vector<48x256xf32>
    %c0_20 = arith.constant 0 : index
    %c0_21 = arith.constant 0 : index
    %24 = vector.load %arg2[%c0_20, %c0_21] : memref<9x256xf32, #tpu.memory_space<vmem>>, vector<1x256xf32>
    %25 = vector.broadcast %24 : vector<1x256xf32> to vector<48x256xf32>
    %26 = arith.mulf %23, %25 : vector<48x256xf32>
    %c0_22 = arith.constant 0 : index
    %c1 = arith.constant 1 : index
    %27 = vector.load %arg10[%c0_22, %c1] : memref<48x290xf32, #tpu.memory_space<vmem>>, vector<48x256xf32>
    %c1_23 = arith.constant 1 : index
    %c0_24 = arith.constant 0 : index
    %28 = vector.load %arg2[%c1_23, %c0_24] : memref<9x256xf32, #tpu.memory_space<vmem>>, vector<1x256xf32>
    %29 = vector.broadcast %28 : vector<1x256xf32> to vector<48x256xf32>
    %30 = arith.mulf %27, %29 : vector<48x256xf32>
    %c0_25 = arith.constant 0 : index
    %c2 = arith.constant 2 : index
    %31 = vector.load %arg10[%c0_25, %c2] : memref<48x290xf32, #tpu.memory_space<vmem>>, vector<48x256xf32>
    %c2_26 = arith.constant 2 : index
    %c0_27 = arith.constant 0 : index
    %32 = vector.load %arg2[%c2_26, %c0_27] : memref<9x256xf32, #tpu.memory_space<vmem>>, vector<1x256xf32>
    %33 = vector.broadcast %32 : vector<1x256xf32> to vector<48x256xf32>
    %34 = arith.mulf %31, %33 : vector<48x256xf32>
    %c0_28 = arith.constant 0 : index
    %c16 = arith.constant 16 : index
    %35 = vector.load %arg10[%c0_28, %c16] : memref<48x290xf32, #tpu.memory_space<vmem>>, vector<48x256xf32>
    %c3 = arith.constant 3 : index
    %c0_29 = arith.constant 0 : index
    %36 = vector.load %arg2[%c3, %c0_29] : memref<9x256xf32, #tpu.memory_space<vmem>>, vector<1x256xf32>
    %37 = vector.broadcast %36 : vector<1x256xf32> to vector<48x256xf32>
    %38 = arith.mulf %35, %37 : vector<48x256xf32>
    %c0_30 = arith.constant 0 : index
    %c18 = arith.constant 18 : index
    %39 = vector.load %arg10[%c0_30, %c18] : memref<48x290xf32, #tpu.memory_space<vmem>>, vector<48x256xf32>
    %c5 = arith.constant 5 : index
    %c0_31 = arith.constant 0 : index
    %40 = vector.load %arg2[%c5, %c0_31] : memref<9x256xf32, #tpu.memory_space<vmem>>, vector<1x256xf32>
    %41 = vector.broadcast %40 : vector<1x256xf32> to vector<48x256xf32>
    %42 = arith.mulf %39, %41 : vector<48x256xf32>
    %c0_32 = arith.constant 0 : index
    %c32 = arith.constant 32 : index
    %43 = vector.load %arg10[%c0_32, %c32] : memref<48x290xf32, #tpu.memory_space<vmem>>, vector<48x256xf32>
    %c6 = arith.constant 6 : index
    %c0_33 = arith.constant 0 : index
    %44 = vector.load %arg2[%c6, %c0_33] : memref<9x256xf32, #tpu.memory_space<vmem>>, vector<1x256xf32>
    %45 = vector.broadcast %44 : vector<1x256xf32> to vector<48x256xf32>
    %46 = arith.mulf %43, %45 : vector<48x256xf32>
    %c0_34 = arith.constant 0 : index
    %c33 = arith.constant 33 : index
    %47 = vector.load %arg10[%c0_34, %c33] : memref<48x290xf32, #tpu.memory_space<vmem>>, vector<48x256xf32>
    %c7 = arith.constant 7 : index
    %c0_35 = arith.constant 0 : index
    %48 = vector.load %arg2[%c7, %c0_35] : memref<9x256xf32, #tpu.memory_space<vmem>>, vector<1x256xf32>
    %49 = vector.broadcast %48 : vector<1x256xf32> to vector<48x256xf32>
    %50 = arith.mulf %47, %49 : vector<48x256xf32>
    %c0_36 = arith.constant 0 : index
    %c34 = arith.constant 34 : index
    %51 = vector.load %arg10[%c0_36, %c34] : memref<48x290xf32, #tpu.memory_space<vmem>>, vector<48x256xf32>
    %c8 = arith.constant 8 : index
    %c0_37 = arith.constant 0 : index
    %52 = vector.load %arg2[%c8, %c0_37] : memref<9x256xf32, #tpu.memory_space<vmem>>, vector<1x256xf32>
    %53 = vector.broadcast %52 : vector<1x256xf32> to vector<48x256xf32>
    %54 = arith.mulf %51, %53 : vector<48x256xf32>
    %55 = tpu.concatenate %26, %30, %34, %38, %19, %42, %46, %50, %54 in 0 : vector<48x256xf32>, vector<48x256xf32>, vector<48x256xf32>, vector<48x256xf32>, vector<48x256xf32>, vector<48x256xf32>, vector<48x256xf32>, vector<48x256xf32>, vector<48x256xf32> -> vector<432x256xf32>
    %c0_38 = arith.constant 0 : index
    %c0_39 = arith.constant 0 : index
    %56 = vector.load %arg8[%c0_38, %c0_39] : memref<12x432xf32, #tpu.memory_space<vmem>>, vector<12x432xf32>
    %cst_40 = arith.constant dense<0.000000e+00> : vector<12x256xf32>
    %57 = tpu.matmul %56, %55, %cst_40 {dimension_numbers = #tpu.dot_dimension_numbers<[1], [0], [0], [1], [0, 0, 1, 1], [], []>} : vector<12x432xf32>, vector<432x256xf32>, vector<12x256xf32> -> vector<12x256xf32>
    %c0_41 = arith.constant 0 : index
    %c0_42 = arith.constant 0 : index
    %c0_43 = arith.constant 0 : index
    %58 = vector.load %arg9[%c0_41, %c0_42, %c0_43] : memref<1x36x256xf32, #tpu.memory_space<vmem>>, vector<1x12x256xf32>
    %59 = vector.shape_cast %58 : vector<1x12x256xf32> to vector<12x256xf32>
    %60 = vector.shape_cast %57 : vector<12x256xf32> to vector<1x12x256xf32>
    tpu.vector_store %arg9[%c0_41, %c0_42, %c0_43], %60 {strides = array<i32>} : memref<1x36x256xf32, #tpu.memory_space<vmem>>, vector<1x12x256xf32>,
    %c0_44 = arith.constant 0 : index
    %c12 = arith.constant 12 : index
    %c0_45 = arith.constant 0 : index
    %61 = vector.load %arg9[%c0_44, %c12, %c0_45] : memref<1x36x256xf32, #tpu.memory_space<vmem>>, vector<1x24x256xf32>
    %62 = vector.shape_cast %61 : vector<1x24x256xf32> to vector<24x256xf32>
    %63 = vector.shape_cast %1 : vector<24x256xf32> to vector<1x24x256xf32>
    tpu.vector_store %arg9[%c0_44, %c12, %c0_45], %63 {strides = array<i32>} : memref<1x36x256xf32, #tpu.memory_space<vmem>>, vector<1x24x256xf32>,
    return
  }
  func.func @transform_0(%arg0: i32) -> (i32, i32, i32) {
    %c0_i32 = arith.constant 0 : i32
    %c0_i32_0 = arith.constant 0 : i32
    %c0_i32_1 = arith.constant 0 : i32
    return %arg0, %c0_i32, %c0_i32_0 : i32, i32, i32
  }
  func.func @transform_1(%arg0: i32) -> (i32, i32) {
    %c0_i32 = arith.constant 0 : i32
    %c0_i32_0 = arith.constant 0 : i32
    %c0_i32_1 = arith.constant 0 : i32
    return %c0_i32, %c0_i32_0 : i32, i32
  }
  func.func @transform_2(%arg0: i32) -> (i32, i32) {
    %c0_i32 = arith.constant 0 : i32
    %c0_i32_0 = arith.constant 0 : i32
    %c0_i32_1 = arith.constant 0 : i32
    return %c0_i32, %c0_i32_0 : i32, i32
  }
  func.func @transform_3(%arg0: i32) -> (i32, i32) {
    %c0_i32 = arith.constant 0 : i32
    %c0_i32_0 = arith.constant 0 : i32
    %c0_i32_1 = arith.constant 0 : i32
    return %c0_i32, %c0_i32_0 : i32, i32
  }
  func.func @transform_4(%arg0: i32) -> (i32, i32) {
    %c0_i32 = arith.constant 0 : i32
    %c0_i32_0 = arith.constant 0 : i32
    %c0_i32_1 = arith.constant 0 : i32
    return %c0_i32, %c0_i32_0 : i32, i32
  }
  func.func @transform_5(%arg0: i32) -> (i32, i32) {
    %c0_i32 = arith.constant 0 : i32
    %c0_i32_0 = arith.constant 0 : i32
    %c0_i32_1 = arith.constant 0 : i32
    return %c0_i32, %c0_i32_0 : i32, i32
  }
  func.func @transform_6(%arg0: i32) -> (i32, i32) {
    %c0_i32 = arith.constant 0 : i32
    %c0_i32_0 = arith.constant 0 : i32
    %c0_i32_1 = arith.constant 0 : i32
    return %c0_i32, %c0_i32_0 : i32, i32
  }
  func.func @transform_7(%arg0: i32) -> (i32, i32) {
    %c0_i32 = arith.constant 0 : i32
    %c0_i32_0 = arith.constant 0 : i32
    %c0_i32_1 = arith.constant 0 : i32
    return %c0_i32, %c0_i32_0 : i32, i32
  }
  func.func @transform_8(%arg0: i32) -> (i32, i32, i32) {
    %c0_i32 = arith.constant 0 : i32
    %c0_i32_0 = arith.constant 0 : i32
    %c0_i32_1 = arith.constant 0 : i32
    return %arg0, %c0_i32, %c0_i32_0 : i32, i32, i32
  }
}

</mosaic_0001>

<llo_original>
// kernel: bottleneck_forward.1
$region0: #{bottleneck_forward.1}
  #allocation0 [shape = 'u32[]', space=smem, size = 0x4, offset = 0x4, fixed_abs, tag = 'smem constant byte address 0x4 - core index']
  #allocation1 [shape = 'u32[144,128]{1,0:T(1,128)}', space=vmem, size = 0x12000, scoped, tag = 'internal scratch']
  #allocation2 [shape = 'f32[48,290]{1,0:T(8,128)}', space=vmem, size = 0x12000, scoped, tag = 'scratch operand']
  %s0 = inlined_call_operand.vmem [shape: f32[2,24,256], index: 0, kind: input, shape index: {}]
  %s1 = inlined_call_operand.vmem [shape: f32[9,256], index: 1, kind: input, shape index: {}]
  %s2 = inlined_call_operand.vmem [shape: f32[24,1], index: 2, kind: input, shape index: {}]
  %s3 = inlined_call_operand.vmem [shape: f32[24,1], index: 3, kind: input, shape index: {}]
  %s4 = inlined_call_operand.vmem [shape: f32[48,24], index: 4, kind: input, shape index: {}]
  %s5 = inlined_call_operand.vmem [shape: f32[48,1], index: 5, kind: input, shape index: {}]
  %s6 = inlined_call_operand.vmem [shape: f32[48,1], index: 6, kind: input, shape index: {}]
  %s7 = inlined_call_operand.vmem [shape: f32[12,432], index: 7, kind: input, shape index: {}]
  %s8 = inlined_call_operand.vmem [shape: f32[2,36,256], index: 8, kind: output, shape index: {}]
  %s9 = sld [smem:[#allocation0]]
  $region65: #{bottleneck_forward.1} parent=0
    _
  %s11 = ssub.s32 1, %s9
  %s12 = scalar_select 0, %s11, %s9
  loop: start=0, step=1, limit=4
  $region2: #{bottleneck_forward.1} parent=0 // loop_pre_header
    _
  $region3: #{bottleneck_forward.1} parent=0 // loop_header
    %s14 = sphi 0, %s18
    %p15 = scmp.ge.s32.totalorder %s14, 4
    %s24 = sphi 0, %s26
    %s27 = sphi 0, %s24
    %s28 = sphi 0, %s27
    %s44 = sphi 0, %s28
    %s48 = sphi 0, %s48
    %s50 = sphi 0, %s48
    %s51 = sphi 0, %s50
    %s65 = sphi 0, %s51
    %s69 = sphi 0, %s69
    %s71 = sphi 0, %s69
    %s72 = sphi 0, %s71
    %s86 = sphi 0, %s72
    %s90 = sphi 0, %s90
    %s92 = sphi 0, %s90
    %s93 = sphi 0, %s92
    %s107 = sphi 0, %s93
    %s111 = sphi 0, %s111
    %s113 = sphi 0, %s111
    %s114 = sphi 0, %s113
    %s128 = sphi 0, %s114
    %s132 = sphi 0, %s132
    %s134 = sphi 0, %s132
    %s135 = sphi 0, %s134
    %s149 = sphi 0, %s135
    %s153 = sphi 0, %s153
    %s155 = sphi 0, %s153
    %s156 = sphi 0, %s155
    %s170 = sphi 0, %s156
    %s174 = sphi 0, %s174
    %s176 = sphi 0, %s174
    %s177 = sphi 0, %s176
    %s191 = sphi 0, %s177
    %s197 = sphi 0, %s199
    %s200 = sphi 0, %s197
    %s201 = sphi 0, %s200
    %s217 = sphi 0, %s201
  $region4: #{bottleneck_forward.1} parent=0 // loop_header_branch
    %17 = sbr.rel (%p15) target = $region8
  $region5: #{bottleneck_forward.1} parent=0 // loop_body
    %s19 = ssub.s32 %s14, 1
    %s20 = ssub.s32 %s14, 2
    %s21 = sadd.s32 %s14, 1
    %s22 = ssub.s32 %s14, %s21
    %p23 = scmp.eq.s32.totalorder %s22, 0
    %s25 = sadd.s32 %s24, 1
    %s26 = scalar_select %p23, %s24, %s25
    %p29 = pneg %p23
    %p30 = scmp.eq.s32.totalorder %s14, 1
    %p31 = por %p29, %p30
    %p32 = scmp.ne.s32.totalorder %s24, %s27
    %p33 = scmp.eq.s32.totalorder %s14, 0
    %p34 = por %p32, %p33
    %p35 = scmp.ne.s32.totalorder %s24, %s27
    %p36 = scmp.eq.s32.totalorder %s19, 1
    %p37 = por %p35, %p36
    %p38 = scmp.ne.s32.totalorder %s27, %s28
    %p39 = scmp.eq.s32.totalorder %s19, 0
    %p40 = por %p38, %p39
    %p41 = scmp.ne.s32.totalorder %s27, %s28
    %p42 = scmp.eq.s32.totalorder %s20, 1
    %p43 = por %p41, %p42
    %p45 = scmp.ne.s32.totalorder %s28, %s44
    %p46 = scmp.eq.s32.totalorder %s20, 0
    %p47 = por %p45, %p46
    %s49 = sadd.s32 %s48, 1
    %p52 = scmp.eq.s32.totalorder %s14, 1
    %p53 = scmp.ne.s32.totalorder %s48, %s50
    %p54 = scmp.eq.s32.totalorder %s14, 0
    %p55 = por %p53, %p54
    %p56 = scmp.ne.s32.totalorder %s48, %s50
    %p57 = scmp.eq.s32.totalorder %s19, 1
    %p58 = por %p56, %p57
    %p59 = scmp.ne.s32.totalorder %s50, %s51
    %p60 = scmp.eq.s32.totalorder %s19, 0
    %p61 = por %p59, %p60
    %p62 = scmp.ne.s32.totalorder %s50, %s51
    %p63 = scmp.eq.s32.totalorder %s20, 1
    %p64 = por %p62, %p63
    %p66 = scmp.ne.s32.totalorder %s51, %s65
    %p67 = scmp.eq.s32.totalorder %s20, 0
    %p68 = por %p66, %p67
    %s70 = sadd.s32 %s69, 1
    %p73 = scmp.eq.s32.totalorder %s14, 1
    %p74 = scmp.ne.s32.totalorder %s69, %s71
    %p75 = scmp.eq.s32.totalorder %s14, 0
    %p76 = por %p74, %p75
    %p77 = scmp.ne.s32.totalorder %s69, %s71
    %p78 = scmp.eq.s32.totalorder %s19, 1
    %p79 = por %p77, %p78
    %p80 = scmp.ne.s32.totalorder %s71, %s72
    %p81 = scmp.eq.s32.totalorder %s19, 0
    %p82 = por %p80, %p81
    %p83 = scmp.ne.s32.totalorder %s71, %s72
    %p84 = scmp.eq.s32.totalorder %s20, 1
    %p85 = por %p83, %p84
    %p87 = scmp.ne.s32.totalorder %s72, %s86
    %p88 = scmp.eq.s32.totalorder %s20, 0
    %p89 = por %p87, %p88
    %s91 = sadd.s32 %s90, 1
    %p94 = scmp.eq.s32.totalorder %s14, 1
    %p95 = scmp.ne.s32.totalorder %s90, %s92
    %p96 = scmp.eq.s32.totalorder %s14, 0
    %p97 = por %p95, %p96
    %p98 = scmp.ne.s32.totalorder %s90, %s92
    %p99 = scmp.eq.s32.totalorder %s19, 1
    %p100 = por %p98, %p99
    %p101 = scmp.ne.s32.totalorder %s92, %s93
    %p102 = scmp.eq.s32.totalorder %s19, 0
    %p103 = por %p101, %p102
    %p104 = scmp.ne.s32.totalorder %s92, %s93
    %p105 = scmp.eq.s32.totalorder %s20, 1
    %p106 = por %p104, %p105
    %p108 = scmp.ne.s32.totalorder %s93, %s107
    %p109 = scmp.eq.s32.totalorder %s20, 0
    %p110 = por %p108, %p109
    %s112 = sadd.s32 %s111, 1
    %p115 = scmp.eq.s32.totalorder %s14, 1
    %p116 = scmp.ne.s32.totalorder %s111, %s113
    %p117 = scmp.eq.s32.totalorder %s14, 0
    %p118 = por %p116, %p117
    %p119 = scmp.ne.s32.totalorder %s111, %s113
    %p120 = scmp.eq.s32.totalorder %s19, 1
    %p121 = por %p119, %p120
    %p122 = scmp.ne.s32.totalorder %s113, %s114
    %p123 = scmp.eq.s32.totalorder %s19, 0
    %p124 = por %p122, %p123
    %p125 = scmp.ne.s32.totalorder %s113, %s114
    %p126 = scmp.eq.s32.totalorder %s20, 1
    %p127 = por %p125, %p126
    %p129 = scmp.ne.s32.totalorder %s114, %s128
    %p130 = scmp.eq.s32.totalorder %s20, 0
    %p131 = por %p129, %p130
    %s133 = sadd.s32 %s132, 1
    %p136 = scmp.eq.s32.totalorder %s14, 1
    %p137 = scmp.ne.s32.totalorder %s132, %s134
    %p138 = scmp.eq.s32.totalorder %s14, 0
    %p139 = por %p137, %p138
    %p140 = scmp.ne.s32.totalorder %s132, %s134
    %p141 = scmp.eq.s32.totalorder %s19, 1
    %p142 = por %p140, %p141
    %p143 = scmp.ne.s32.totalorder %s134, %s135
    %p144 = scmp.eq.s32.totalorder %s19, 0
    %p145 = por %p143, %p144
    %p146 = scmp.ne.s32.totalorder %s134, %s135
    %p147 = scmp.eq.s32.totalorder %s20, 1
    %p148 = por %p146, %p147
    %p150 = scmp.ne.s32.totalorder %s135, %s149
    %p151 = scmp.eq.s32.totalorder %s20, 0
    %p152 = por %p150, %p151
    %s154 = sadd.s32 %s153, 1
    %p157 = scmp.eq.s32.totalorder %s14, 1
    %p158 = scmp.ne.s32.totalorder %s153, %s155
    %p159 = scmp.eq.s32.totalorder %s14, 0
    %p160 = por %p158, %p159
    %p161 = scmp.ne.s32.totalorder %s153, %s155
    %p162 = scmp.eq.s32.totalorder %s19, 1
    %p163 = por %p161, %p162
    %p164 = scmp.ne.s32.totalorder %s155, %s156
    %p165 = scmp.eq.s32.totalorder %s19, 0
    %p166 = por %p164, %p165
    %p167 = scmp.ne.s32.totalorder %s155, %s156
    %p168 = scmp.eq.s32.totalorder %s20, 1
    %p169 = por %p167, %p168
    %p171 = scmp.ne.s32.totalorder %s156, %s170
    %p172 = scmp.eq.s32.totalorder %s20, 0
    %p173 = por %p171, %p172
    %s175 = sadd.s32 %s174, 1
    %p178 = scmp.eq.s32.totalorder %s14, 1
    %p179 = scmp.ne.s32.totalorder %s174, %s176
    %p180 = scmp.eq.s32.totalorder %s14, 0
    %p181 = por %p179, %p180
    %p182 = scmp.ne.s32.totalorder %s174, %s176
    %p183 = scmp.eq.s32.totalorder %s19, 1
    %p184 = por %p182, %p183
    %p185 = scmp.ne.s32.totalorder %s176, %s177
    %p186 = scmp.eq.s32.totalorder %s19, 0
    %p187 = por %p185, %p186
    %p188 = scmp.ne.s32.totalorder %s176, %s177
    %p189 = scmp.eq.s32.totalorder %s20, 1
    %p190 = por %p188, %p189
    %p192 = scmp.ne.s32.totalorder %s177, %s191
    %p193 = scmp.eq.s32.totalorder %s20, 0
    %p194 = por %p192, %p193
    %s195 = ssub.s32 %s14, %s21
    %p196 = scmp.eq.s32.totalorder %s195, 0
    %s198 = sadd.s32 %s197, 1
    %s199 = scalar_select %p196, %s197, %s198
    %p202 = pneg %p196
    %p203 = scmp.eq.s32.totalorder %s14, 1
    %p204 = por %p202, %p203
    %p205 = scmp.ne.s32.totalorder %s197, %s200
    %p206 = scmp.eq.s32.totalorder %s14, 0
    %p207 = por %p205, %p206
    %p208 = scmp.ne.s32.totalorder %s197, %s200
    %p209 = scmp.eq.s32.totalorder %s19, 1
    %p210 = por %p208, %p209
    %p211 = scmp.ne.s32.totalorder %s200, %s201
    %p212 = scmp.eq.s32.totalorder %s19, 0
    %p213 = por %p211, %p212
    %p214 = scmp.ne.s32.totalorder %s200, %s201
    %p215 = scmp.eq.s32.totalorder %s20, 1
    %p216 = por %p214, %p215
    %p218 = scmp.ne.s32.totalorder %s201, %s217
    %p219 = scmp.eq.s32.totalorder %s20, 0
    %p220 = por %p218, %p219
    %p221 = scmp.le.s32.totalorder 1, %s14
    %p222 = scmp.lt.s32.totalorder %s14, 3
    %p223 = pnand %p221, %p222
    %p224 = pneg %p223
    // Predicated region
    $region9: #{bottleneck_forward.1} parent=5 // pred_check
      _
    $region10: #{bottleneck_forward.1} parent=5 // pred_check_branch
      %226 = sbr.rel (%p223) target = $region12
    $region11: #{bottleneck_forward.1} parent=5 // pred_region
      %s227 = ssub.s32 %s14, 1
      // Predicated region
      $region13: #{bottleneck_forward.1} parent=11 // pred_check
        %p228 = pneg %p61
      $region14: #{bottleneck_forward.1} parent=11 // pred_check_branch
        %230 = sbr.rel (%p228) target = $region16
      $region15: #{bottleneck_forward.1} parent=11 // pred_region
        _
      $region16: #{bottleneck_forward.1} parent=11 // pred_fallthru
        _
      // Predicated region
      $region17: #{bottleneck_forward.1} parent=11 // pred_check
        %p231 = pneg %p82
      $region18: #{bottleneck_forward.1} parent=11 // pred_check_branch
        %233 = sbr.rel (%p231) target = $region20
      $region19: #{bottleneck_forward.1} parent=11 // pred_region
        _
      $region20: #{bottleneck_forward.1} parent=11 // pred_fallthru
        _
      // Predicated region
      $region21: #{bottleneck_forward.1} parent=11 // pred_check
        %p234 = pneg %p103
      $region22: #{bottleneck_forward.1} parent=11 // pred_check_branch
        %236 = sbr.rel (%p234) target = $region24
      $region23: #{bottleneck_forward.1} parent=11 // pred_region
        _
      $region24: #{bottleneck_forward.1} parent=11 // pred_fallthru
        _
      // Predicated region
      $region25: #{bottleneck_forward.1} parent=11 // pred_check
        %p237 = pneg %p124
      $region26: #{bottleneck_forward.1} parent=11 // pred_check_branch
        %239 = sbr.rel (%p237) target = $region28
      $region27: #{bottleneck_forward.1} parent=11 // pred_region
        _
      $region28: #{bottleneck_forward.1} parent=11 // pred_fallthru
        _
      // Predicated region
      $region29: #{bottleneck_forward.1} parent=11 // pred_check
        %p240 = pneg %p145
      $region30: #{bottleneck_forward.1} parent=11 // pred_check_branch
        %242 = sbr.rel (%p240) target = $region32
      $region31: #{bottleneck_forward.1} parent=11 // pred_region
        _
      $region32: #{bottleneck_forward.1} parent=11 // pred_fallthru
        _
      // Predicated region
      $region33: #{bottleneck_forward.1} parent=11 // pred_check
        %p243 = pneg %p166
      $region34: #{bottleneck_forward.1} parent=11 // pred_check_branch
        %245 = sbr.rel (%p243) target = $region36
      $region35: #{bottleneck_forward.1} parent=11 // pred_region
        _
      $region36: #{bottleneck_forward.1} parent=11 // pred_fallthru
        _
      // Predicated region
      $region37: #{bottleneck_forward.1} parent=11 // pred_check
        %p246 = pneg %p187
      $region38: #{bottleneck_forward.1} parent=11 // pred_check_branch
        %248 = sbr.rel (%p246) target = $region40
      $region39: #{bottleneck_forward.1} parent=11 // pred_region
        _
      $region40: #{bottleneck_forward.1} parent=11 // pred_fallthru
        _
    $region12: #{bottleneck_forward.1} parent=5 // pred_fallthru
      _
    %p249 = scmp.lt.s32.totalorder %s14, 2
    // Predicated region
    $region41: #{bottleneck_forward.1} parent=5 // pred_check
      %p250 = pneg %p249
    $region42: #{bottleneck_forward.1} parent=5 // pred_check_branch
      %252 = sbr.rel (%p250) target = $region44
    $region43: #{bottleneck_forward.1} parent=5 // pred_region
      // Predicated region
      $region45: #{bottleneck_forward.1} parent=43 // pred_check
        %p253 = pneg %p34
      $region46: #{bottleneck_forward.1} parent=43 // pred_check_branch
        %255 = sbr.rel (%p253) target = $region48
      $region47: #{bottleneck_forward.1} parent=43 // pred_region
        %p256 = scmp.lt.s32.totalorder %s14, 1
        %s257 = scalar_select %p256, %s14, 1
        %s258 = smul.addr %s257, 6
        %s259 = smul.addr %s258, 8
        %s260 = scalar_lea.vmem %s0, %s259
      $region48: #{bottleneck_forward.1} parent=43 // pred_fallthru
        _
    $region44: #{bottleneck_forward.1} parent=5 // pred_fallthru
      _
    %p261 = scmp.le.s32.totalorder 1, %s14
    %p262 = scmp.lt.s32.totalorder %s14, 3
    %p263 = pnand %p261, %p262
    %p264 = pneg %p263
    // Predicated region
    $region49: #{bottleneck_forward.1} parent=5 // pred_check
      _
    $region50: #{bottleneck_forward.1} parent=5 // pred_check_branch
      %266 = sbr.rel (%p263) target = $region52
    $region51: #{bottleneck_forward.1} parent=5 // pred_region
      %s267 = ssub.s32 %s14, 1
      %p268 = scmp.lt.s32.totalorder %s19, 1
      %s269 = scalar_select %p268, %s19, 1
      %s270 = smul.addr %s269, 6
      %s271 = smul.addr %s270, 8
      %s272 = scalar_lea.vmem %s0, %s271
      %p273 = pneg %p40
      %p274 = pneg %p37
      %p275 = pneg %p61
      %p276 = pneg %p58
      %p277 = pneg %p82
      %p278 = pneg %p79
      %p279 = pneg %p103
      %p280 = pneg %p100
      %p281 = pneg %p124
      %p282 = pneg %p121
      %p283 = pneg %p145
      %p284 = pneg %p142
      %p285 = pneg %p166
      %p286 = pneg %p163
      %p287 = pneg %p187
      %p288 = pneg %p184
      %p289 = pneg %p213
      %p290 = pneg %p210
      %p291 = scmp.lt.s32.totalorder %s19, 1
      %s292 = scalar_select %p291, %s19, 1
      %s293 = smul.addr %s292, 10
      %s294 = smul.addr %s293, 8
      %s295 = scalar_lea.vmem %s8, %s294
      %p296 = scmp.lt.s32.totalorder %s19, 1
      %s297 = scalar_select %p296, %s19, 1
      %s298 = smul.addr %s297, 6
      %s299 = smul.addr %s298, 8
      %s300 = scalar_lea.vmem %s0, %s299
      %p301 = scmp.lt.s32.totalorder %s19, 1
      %s302 = scalar_select %p301, %s19, 1
      %s303 = smul.addr %s302, 10
      %s304 = smul.addr %s303, 8
      %s305 = scalar_lea.vmem %s8, %s304
      %v306 = vld [vmem:[%s300] sm:$0xff]
      %v307 = vld [vmem:[%s300 + $0x8] sm:$0xff]
      %v308 = vld [vmem:[%s300 + $0x10] sm:$0xff]
      %v309 = vld [vmem:[%s300 + $0x18] sm:$0xff]
      %v310 = vld [vmem:[%s300 + $0x20] sm:$0xff]
      %v311 = vld [vmem:[%s300 + $0x28] sm:$0xff]
      %v312 = vld [vmem:[%s2] sm:$0xff]
      %v313 = vld [vmem:[%s2 + $0x8] sm:$0xff]
      %v314 = vld [vmem:[%s2 + $0x10] sm:$0xff]
      %316 = vset.pattern.permute.xlu0 0
      %317 = vperm.xlu0 %316, %v312
      %v318 = vpop.permute.xlu0 %317
      %321 = vset.pattern.permute.xlu0 0
      %322 = vperm.xlu0 %321, %v313
      %v323 = vpop.permute.xlu0 %322
      %326 = vset.pattern.permute.xlu0 0
      %327 = vperm.xlu0 %326, %v314
      %v328 = vpop.permute.xlu0 %327
      %v330 = vmul.f32 %v306, %v318
      %v331 = vmul.f32 %v307, %v318
      %v332 = vmul.f32 %v308, %v323
      %v333 = vmul.f32 %v309, %v323
      %v334 = vmul.f32 %v310, %v328
      %v335 = vmul.f32 %v311, %v328
      %v336 = vld [vmem:[%s3] sm:$0xff]
      %v337 = vld [vmem:[%s3 + $0x8] sm:$0xff]
      %v338 = vld [vmem:[%s3 + $0x10] sm:$0xff]
      %340 = vset.pattern.permute.xlu0 0
      %341 = vperm.xlu0 %340, %v336
      %v342 = vpop.permute.xlu0 %341
      %345 = vset.pattern.permute.xlu0 0
      %346 = vperm.xlu0 %345, %v337
      %v347 = vpop.permute.xlu0 %346
      %350 = vset.pattern.permute.xlu0 0
      %351 = vperm.xlu0 %350, %v338
      %v352 = vpop.permute.xlu0 %351
      %v354 = vadd.f32 %v330, %v342
      %v355 = vadd.f32 %v331, %v342
      %v356 = vadd.f32 %v332, %v347
      %v357 = vadd.f32 %v333, %v347
      %v358 = vadd.f32 %v334, %v352
      %v359 = vadd.f32 %v335, %v352
      %v360 = vmax.f32 %v354, 0.0
      %v361 = vmax.f32 %v355, 0.0
      %v362 = vmax.f32 %v356, 0.0
      %v363 = vmax.f32 %v357, 0.0
      %v364 = vmax.f32 %v358, 0.0
      %v365 = vmax.f32 %v359, 0.0
      %v366 = vld [vmem:[%s4] sm:$0xff]
      %v367 = vld [vmem:[%s4 + $0x8] sm:$0xff]
      %v368 = vld [vmem:[%s4 + $0x10] sm:$0xff]
      %v369 = vld [vmem:[%s4 + $0x18] sm:$0xff]
      %v370 = vld [vmem:[%s4 + $0x20] sm:$0xff]
      %v371 = vld [vmem:[%s4 + $0x28] sm:$0xff]
      %vm372 = vcmask 195584
      %v374 = vsel %vm372, %v366, 0
      %v377 = vsel %vm372, %v367, 0
      %v380 = vsel %vm372, %v368, 0
      %v383 = vsel %vm372, %v369, 0
      %v386 = vsel %vm372, %v370, 0
      %v389 = vsel %vm372, %v371, 0
      %391 = vmatprep.subr.mxu0 0.0
      %392 = vmatpush1.msra.mxu0 0.0
      %393 = vmatprep.subr.mxu0 0.0
      %394 = vmatpush1.msra.mxu0 0.0
      %395 = vmatprep.subr.mxu0 0.0
      %396 = vmatpush1.msra.mxu0 0.0
      %397 = vmatprep.subr.mxu0 0.0
      %398 = vmatpush1.msra.mxu0 0.0
      %399 = vmatprep.subr.mxu0 0.0
      %400 = vmatpush1.msra.mxu0 0.0
      %401 = vmatprep.subr.mxu0 0.0
      %402 = vmatpush1.msra.mxu0 0.0
      %403 = vmatprep.subr.mxu0 0.0
      %404 = vmatpush1.msra.mxu0 0.0
      %405 = vmatprep.subr.mxu0 0.0
      %406 = vmatpush1.msra.mxu0 0.0
      %407 = vmatprep.subr.mxu0 0.0
      %408 = vmatpush1.msra.mxu0 0.0
      %409 = vmatprep.subr.mxu0 0.0
      %410 = vmatpush1.msra.mxu0 0.0
      %411 = vmatprep.subr.mxu0 0.0
      %412 = vmatpush1.msra.mxu0 0.0
      %413 = vmatprep.subr.mxu0 0.0
      %414 = vmatpush1.msra.mxu0 0.0
      %415 = vmatprep.subr.mxu0 0.0
      %416 = vmatpush1.msra.mxu0 0.0
      %417 = vmatprep.subr.mxu0 %v365
      %418 = vmatpush1.msra.mxu0 %v364
      %419 = vmatprep.subr.mxu0 %v363
      %420 = vmatpush1.msra.mxu0 %v362
      %421 = vmatprep.subr.mxu0 %v361
      %422 = vmatpush1.msra.mxu0 %v360
      %423 = vmatprep.subr.mxu0 0.0
      %424 = vmatpush2.msra.mxu0 0.0
      %425 = vmatprep.subr.mxu0 0.0
      %426 = vmatpush2.msra.mxu0 0.0
      %427 = vmatprep.subr.mxu0 0.0
      %428 = vmatpush2.msra.mxu0 0.0
      %429 = vmatprep.subr.mxu0 0.0
      %430 = vmatpush2.msra.mxu0 0.0
      %431 = vmatprep.subr.mxu0 0.0
      %432 = vmatpush2.msra.mxu0 0.0
      %433 = vmatprep.subr.mxu0 0.0
      %434 = vmatpush2.msra.mxu0 0.0
      %435 = vmatprep.subr.mxu0 0.0
      %436 = vmatpush2.msra.mxu0 0.0
      %437 = vmatprep.subr.mxu0 0.0
      %438 = vmatpush2.msra.mxu0 0.0
      %439 = vmatprep.subr.mxu0 0.0
      %440 = vmatpush2.msra.mxu0 0.0
      %441 = vmatprep.subr.mxu0 0.0
      %442 = vmatpush2.msra.mxu0 0.0
      %443 = vmatprep.subr.mxu0 0.0
      %444 = vmatpush2.msra.mxu0 0.0
      %445 = vmatprep.subr.mxu0 0.0
      %446 = vmatpush2.msra.mxu0 0.0
      %447 = vmatprep.subr.mxu0 0.0
      %448 = vmatpush2.msra.mxu0 0.0
      %449 = vmatprep.subr.mxu0 0.0
      %450 = vmatpush2.msra.mxu0 0.0
      %451 = vmatprep.subr.mxu0 0.0
      %452 = vmatpush2.msra.mxu0 0.0
      %453 = vmatprep.subr.mxu0 0.0
      %454 = vmatpush2.msra.mxu0 0.0
      %455 = vmatprep.mubr.f32.mxu0 0.0
      %456 = vmatmul.mubr.f32.gmra.mxu0 %v374
      %v457 = vpop.f32.mrf.mxu0
      %v458 = vadd.f32 0.0, %v457
      %v459 = vpop.f32.mrf.mxu0
      %v460 = vadd.f32 0.0, %v459
      %461 = vmatprep.mubr.f32.mxu0 0.0
      %462 = vmatmul.mubr.f32.gmra.mxu0 %v377
      %v463 = vpop.f32.mrf.mxu0
      %v464 = vadd.f32 0.0, %v463
      %v465 = vpop.f32.mrf.mxu0
      %v466 = vadd.f32 0.0, %v465
      %467 = vmatprep.mubr.f32.mxu0 0.0
      %468 = vmatmul.mubr.f32.gmra.mxu0 %v380
      %v469 = vpop.f32.mrf.mxu0
      %v470 = vadd.f32 0.0, %v469
      %v471 = vpop.f32.mrf.mxu0
      %v472 = vadd.f32 0.0, %v471
      %473 = vmatprep.mubr.f32.mxu0 0.0
      %474 = vmatmul.mubr.f32.gmra.mxu0 %v383
      %v475 = vpop.f32.mrf.mxu0
      %v476 = vadd.f32 0.0, %v475
      %v477 = vpop.f32.mrf.mxu0
      %v478 = vadd.f32 0.0, %v477
      %479 = vmatprep.mubr.f32.mxu0 0.0
      %480 = vmatmul.mubr.f32.gmra.mxu0 %v386
      %v481 = vpop.f32.mrf.mxu0
      %v482 = vadd.f32 0.0, %v481
      %v483 = vpop.f32.mrf.mxu0
      %v484 = vadd.f32 0.0, %v483
      %485 = vmatprep.mubr.f32.mxu0 0.0
      %486 = vmatmul.mubr.f32.gmra.mxu0 %v389
      %v487 = vpop.f32.mrf.mxu0
      %v488 = vadd.f32 0.0, %v487
      %v489 = vpop.f32.mrf.mxu0
      %v490 = vadd.f32 0.0, %v489
      %491 = vdwg.mxu0
      %v492 = vld [vmem:[%s5] sm:$0xff]
      %v493 = vld [vmem:[%s5 + $0x8] sm:$0xff]
      %v494 = vld [vmem:[%s5 + $0x10] sm:$0xff]
      %v495 = vld [vmem:[%s5 + $0x18] sm:$0xff]
      %v496 = vld [vmem:[%s5 + $0x20] sm:$0xff]
      %v497 = vld [vmem:[%s5 + $0x28] sm:$0xff]
      %499 = vset.pattern.permute.xlu0 0
      %500 = vperm.xlu0 %499, %v492
      %v501 = vpop.permute.xlu0 %500
      %504 = vset.pattern.permute.xlu0 0
      %505 = vperm.xlu0 %504, %v493
      %v506 = vpop.permute.xlu0 %505
      %509 = vset.pattern.permute.xlu0 0
      %510 = vperm.xlu0 %509, %v494
      %v511 = vpop.permute.xlu0 %510
      %514 = vset.pattern.permute.xlu0 0
      %515 = vperm.xlu0 %514, %v495
      %v516 = vpop.permute.xlu0 %515
      %519 = vset.pattern.permute.xlu0 0
      %520 = vperm.xlu0 %519, %v496
      %v521 = vpop.permute.xlu0 %520
      %524 = vset.pattern.permute.xlu0 0
      %525 = vperm.xlu0 %524, %v497
      %v526 = vpop.permute.xlu0 %525
      %v528 = vmul.f32 %v458, %v501
      %v529 = vmul.f32 %v460, %v501
      %v530 = vmul.f32 %v464, %v506
      %v531 = vmul.f32 %v466, %v506
      %v532 = vmul.f32 %v470, %v511
      %v533 = vmul.f32 %v472, %v511
      %v534 = vmul.f32 %v476, %v516
      %v535 = vmul.f32 %v478, %v516
      %v536 = vmul.f32 %v482, %v521
      %v537 = vmul.f32 %v484, %v521
      %v538 = vmul.f32 %v488, %v526
      %v539 = vmul.f32 %v490, %v526
      %v540 = vld [vmem:[%s6] sm:$0xff]
      %v541 = vld [vmem:[%s6 + $0x8] sm:$0xff]
      %v542 = vld [vmem:[%s6 + $0x10] sm:$0xff]
      %v543 = vld [vmem:[%s6 + $0x18] sm:$0xff]
      %v544 = vld [vmem:[%s6 + $0x20] sm:$0xff]
      %v545 = vld [vmem:[%s6 + $0x28] sm:$0xff]
      %547 = vset.pattern.permute.xlu0 0
      %548 = vperm.xlu0 %547, %v540
      %v549 = vpop.permute.xlu0 %548
      %552 = vset.pattern.permute.xlu0 0
      %553 = vperm.xlu0 %552, %v541
      %v554 = vpop.permute.xlu0 %553
      %557 = vset.pattern.permute.xlu0 0
      %558 = vperm.xlu0 %557, %v542
      %v559 = vpop.permute.xlu0 %558
      %562 = vset.pattern.permute.xlu0 0
      %563 = vperm.xlu0 %562, %v543
      %v564 = vpop.permute.xlu0 %563
      %567 = vset.pattern.permute.xlu0 0
      %568 = vperm.xlu0 %567, %v544
      %v569 = vpop.permute.xlu0 %568
      %572 = vset.pattern.permute.xlu0 0
      %573 = vperm.xlu0 %572, %v545
      %v574 = vpop.permute.xlu0 %573
      %v576 = vadd.f32 %v528, %v549
      %v577 = vadd.f32 %v529, %v549
      %v578 = vadd.f32 %v530, %v554
      %v579 = vadd.f32 %v531, %v554
      %v580 = vadd.f32 %v532, %v559
      %v581 = vadd.f32 %v533, %v559
      %v582 = vadd.f32 %v534, %v564
      %v583 = vadd.f32 %v535, %v564
      %v584 = vadd.f32 %v536, %v569
      %v585 = vadd.f32 %v537, %v569
      %v586 = vadd.f32 %v538, %v574
      %v587 = vadd.f32 %v539, %v574
      %v588 = vmax.f32 %v576, 0.0
      %v589 = vmax.f32 %v577, 0.0
      %v590 = vmax.f32 %v578, 0.0
      %v591 = vmax.f32 %v579, 0.0
      %v592 = vmax.f32 %v580, 0.0
      %v593 = vmax.f32 %v581, 0.0
      %v594 = vmax.f32 %v582, 0.0
      %v595 = vmax.f32 %v583, 0.0
      %v596 = vmax.f32 %v584, 0.0
      %v597 = vmax.f32 %v585, 0.0
      %v598 = vmax.f32 %v586, 0.0
      %v599 = vmax.f32 %v587, 0.0
      %600 = vst [vmem:[#allocation2] sm:$0xff] 0.0
      %601 = vst [vmem:[#allocation2 + $0x8] sm:$0xff] 0.0
      %vm602 = vcmask 277504
      %603 = vst.msk [vmem:[#allocation2 + $0x10] sm:$0xff] %vm602, 0.0
      %604 = vst [vmem:[#allocation2 + $0x18] sm:$0xff] 0.0
      %605 = vst [vmem:[#allocation2 + $0x20] sm:$0xff] 0.0
      %606 = vst.msk [vmem:[#allocation2 + $0x28] sm:$0xff] %vm602, 0.0
      %607 = vst [vmem:[#allocation2 + $0x30] sm:$0xff] 0.0
      %608 = vst [vmem:[#allocation2 + $0x38] sm:$0xff] 0.0
      %609 = vst.msk [vmem:[#allocation2 + $0x40] sm:$0xff] %vm602, 0.0
      %610 = vst [vmem:[#allocation2 + $0x48] sm:$0xff] 0.0
      %611 = vst [vmem:[#allocation2 + $0x50] sm:$0xff] 0.0
      %612 = vst.msk [vmem:[#allocation2 + $0x58] sm:$0xff] %vm602, 0.0
      %613 = vst [vmem:[#allocation2 + $0x60] sm:$0xff] 0.0
      %614 = vst [vmem:[#allocation2 + $0x68] sm:$0xff] 0.0
      %615 = vst.msk [vmem:[#allocation2 + $0x70] sm:$0xff] %vm602, 0.0
      %616 = vst [vmem:[#allocation2 + $0x78] sm:$0xff] 0.0
      %617 = vst [vmem:[#allocation2 + $0x80] sm:$0xff] 0.0
      %618 = vst.msk [vmem:[#allocation2 + $0x88] sm:$0xff] %vm602, 0.0
      %631 = vrot.lane.b32.xlu0 %v588, 17
      %v632 = vpop.permute.xlu0 %631
      %633 = vrot.lane.b32.xlu0 %v589, 17
      %v634 = vpop.permute.xlu0 %633
      %635 = vrot.lane.b32.xlu0 %v590, 17
      %v636 = vpop.permute.xlu0 %635
      %637 = vrot.lane.b32.xlu0 %v591, 17
      %v638 = vpop.permute.xlu0 %637
      %639 = vrot.lane.b32.xlu0 %v592, 17
      %v640 = vpop.permute.xlu0 %639
      %641 = vrot.lane.b32.xlu0 %v593, 17
      %v642 = vpop.permute.xlu0 %641
      %643 = vrot.lane.b32.xlu0 %v594, 17
      %v644 = vpop.permute.xlu0 %643
      %645 = vrot.lane.b32.xlu0 %v595, 17
      %v646 = vpop.permute.xlu0 %645
      %647 = vrot.lane.b32.xlu0 %v596, 17
      %v648 = vpop.permute.xlu0 %647
      %649 = vrot.lane.b32.xlu0 %v597, 17
      %v650 = vpop.permute.xlu0 %649
      %651 = vrot.lane.b32.xlu0 %v598, 17
      %v652 = vpop.permute.xlu0 %651
      %653 = vrot.lane.b32.xlu0 %v599, 17
      %v654 = vpop.permute.xlu0 %653
      %vm655 = vcmask 138240
      %v656 = vsel %vm655, %v632, %v634
      %v657 = vsel %vm655, %v636, %v638
      %v658 = vsel %vm655, %v640, %v642
      %v659 = vsel %vm655, %v644, %v646
      %v660 = vsel %vm655, %v648, %v650
      %v661 = vsel %vm655, %v652, %v654
      %vm680 = vcmask 1047688
      %681 = vst.msk [vmem:[#allocation2] sm:$0xff] %vm680, %v632
      %682 = vst [vmem:[#allocation2 + $0x8] sm:$0xff] %v656
      %683 = vst.msk [vmem:[#allocation2 + $0x10] sm:$0xff] %vm655, %v634
      %684 = vst.msk [vmem:[#allocation2 + $0x18] sm:$0xff] %vm680, %v636
      %685 = vst [vmem:[#allocation2 + $0x20] sm:$0xff] %v657
      %686 = vst.msk [vmem:[#allocation2 + $0x28] sm:$0xff] %vm655, %v638
      %687 = vst.msk [vmem:[#allocation2 + $0x30] sm:$0xff] %vm680, %v640
      %688 = vst [vmem:[#allocation2 + $0x38] sm:$0xff] %v658
      %689 = vst.msk [vmem:[#allocation2 + $0x40] sm:$0xff] %vm655, %v642
      %690 = vst.msk [vmem:[#allocation2 + $0x48] sm:$0xff] %vm680, %v644
      %691 = vst [vmem:[#allocation2 + $0x50] sm:$0xff] %v659
      %692 = vst.msk [vmem:[#allocation2 + $0x58] sm:$0xff] %vm655, %v646
      %693 = vst.msk [vmem:[#allocation2 + $0x60] sm:$0xff] %vm680, %v648
      %694 = vst [vmem:[#allocation2 + $0x68] sm:$0xff] %v660
      %695 = vst.msk [vmem:[#allocation2 + $0x70] sm:$0xff] %vm655, %v650
      %696 = vst.msk [vmem:[#allocation2 + $0x78] sm:$0xff] %vm680, %v652
      %697 = vst [vmem:[#allocation2 + $0x80] sm:$0xff] %v661
      %698 = vst.msk [vmem:[#allocation2 + $0x88] sm:$0xff] %vm655, %v654
      %v699 = vld [vmem:[#allocation2] sm:$0xff]
      %v700 = vld [vmem:[#allocation2 + $0x8] sm:$0xff]
      %v701 = vld [vmem:[#allocation2 + $0x18] sm:$0xff]
      %v702 = vld [vmem:[#allocation2 + $0x20] sm:$0xff]
      %v703 = vld [vmem:[#allocation2 + $0x30] sm:$0xff]
      %v704 = vld [vmem:[#allocation2 + $0x38] sm:$0xff]
      %v705 = vld [vmem:[#allocation2 + $0x48] sm:$0xff]
      %v706 = vld [vmem:[#allocation2 + $0x50] sm:$0xff]
      %v707 = vld [vmem:[#allocation2 + $0x60] sm:$0xff]
      %v708 = vld [vmem:[#allocation2 + $0x68] sm:$0xff]
      %v709 = vld [vmem:[#allocation2 + $0x78] sm:$0xff]
      %v710 = vld [vmem:[#allocation2 + $0x80] sm:$0xff]
      %v711 = vld [vmem:[%s1] ss:$8 sm:$0x3]
      %v713 = vlaneseq
      %v714 = vshrl.u32 %v713, 7
      %v715 = vsub.s32 0, %v714
      %v716 = vrot.slane %v711, %v715
      %v717 = vlaneseq
      %v718 = vshrl.u32 %v717, 7
      %v719 = vsub.s32 1, %v718
      %v720 = vrot.slane %v711, %v719
      %v723 = vmul.f32 %v699, %v716
      %v724 = vmul.f32 %v700, %v720
      %v725 = vmul.f32 %v701, %v716
      %v726 = vmul.f32 %v702, %v720
      %v727 = vmul.f32 %v703, %v716
      %v728 = vmul.f32 %v704, %v720
      %v729 = vmul.f32 %v705, %v716
      %v730 = vmul.f32 %v706, %v720
      %v731 = vmul.f32 %v707, %v716
      %v732 = vmul.f32 %v708, %v720
      %v733 = vmul.f32 %v709, %v716
      %v734 = vmul.f32 %v710, %v720
      %v735 = vld [vmem:[#allocation2 + $0x10] sm:$0xff]
      %v736 = vld [vmem:[#allocation2 + $0x28] sm:$0xff]
      %v737 = vld [vmem:[#allocation2 + $0x40] sm:$0xff]
      %v738 = vld [vmem:[#allocation2 + $0x58] sm:$0xff]
      %v739 = vld [vmem:[#allocation2 + $0x70] sm:$0xff]
      %v740 = vld [vmem:[#allocation2 + $0x88] sm:$0xff]
      %s741 = scalar_lea.vmem %s1, 1
      %v742 = vld [vmem:[%s741] ss:$8 sm:$0x3]
      %v744 = vlaneseq
      %v745 = vshrl.u32 %v744, 7
      %v746 = vsub.s32 0, %v745
      %v747 = vrot.slane %v742, %v746
      %v748 = vlaneseq
      %v749 = vshrl.u32 %v748, 7
      %v750 = vsub.s32 1, %v749
      %v751 = vrot.slane %v742, %v750
      %752 = vrot.lane.b32.xlu0 %v747, 1
      %v753 = vpop.permute.xlu0 %752
      %754 = vrot.lane.b32.xlu0 %v751, 1
      %v755 = vpop.permute.xlu0 %754
      %vm756 = vcmask 7168
      %v757 = vsel %vm756, %v753, %v755
      %v761 = vmul.f32 %v699, %v753
      %v762 = vmul.f32 %v700, %v757
      %v763 = vmul.f32 %v735, %v755
      %v764 = vmul.f32 %v701, %v753
      %v765 = vmul.f32 %v702, %v757
      %v766 = vmul.f32 %v736, %v755
      %v767 = vmul.f32 %v703, %v753
      %v768 = vmul.f32 %v704, %v757
      %v769 = vmul.f32 %v737, %v755
      %v770 = vmul.f32 %v705, %v753
      %v771 = vmul.f32 %v706, %v757
      %v772 = vmul.f32 %v738, %v755
      %v773 = vmul.f32 %v707, %v753
      %v774 = vmul.f32 %v708, %v757
      %v775 = vmul.f32 %v739, %v755
      %v776 = vmul.f32 %v709, %v753
      %v777 = vmul.f32 %v710, %v757
      %v778 = vmul.f32 %v740, %v755
      %s779 = scalar_lea.vmem %s1, 2
      %v780 = vld [vmem:[%s779] ss:$8 sm:$0x3]
      %v782 = vlaneseq
      %v783 = vshrl.u32 %v782, 7
      %v784 = vsub.s32 0, %v783
      %v785 = vrot.slane %v780, %v784
      %v786 = vlaneseq
      %v787 = vshrl.u32 %v786, 7
      %v788 = vsub.s32 1, %v787
      %v789 = vrot.slane %v780, %v788
      %790 = vrot.lane.b32.xlu0 %v785, 2
      %v791 = vpop.permute.xlu0 %790
      %792 = vrot.lane.b32.xlu0 %v789, 2
      %v793 = vpop.permute.xlu0 %792
      %vm794 = vcmask 15360
      %v795 = vsel %vm794, %v791, %v793
      %v799 = vmul.f32 %v699, %v791
      %v800 = vmul.f32 %v700, %v795
      %v801 = vmul.f32 %v735, %v793
      %v802 = vmul.f32 %v701, %v791
      %v803 = vmul.f32 %v702, %v795
      %v804 = vmul.f32 %v736, %v793
      %v805 = vmul.f32 %v703, %v791
      %v806 = vmul.f32 %v704, %v795
      %v807 = vmul.f32 %v737, %v793
      %v808 = vmul.f32 %v705, %v791
      %v809 = vmul.f32 %v706, %v795
      %v810 = vmul.f32 %v738, %v793
      %v811 = vmul.f32 %v707, %v791
      %v812 = vmul.f32 %v708, %v795
      %v813 = vmul.f32 %v739, %v793
      %v814 = vmul.f32 %v709, %v791
      %v815 = vmul.f32 %v710, %v795
      %v816 = vmul.f32 %v740, %v793
      %s817 = scalar_lea.vmem %s1, 3
      %v818 = vld [vmem:[%s817] ss:$8 sm:$0x3]
      %v820 = vlaneseq
      %v821 = vshrl.u32 %v820, 7
      %v822 = vsub.s32 0, %v821
      %v823 = vrot.slane %v818, %v822
      %v824 = vlaneseq
      %v825 = vshrl.u32 %v824, 7
      %v826 = vsub.s32 1, %v825
      %v827 = vrot.slane %v818, %v826
      %828 = vrot.lane.b32.xlu0 %v823, 16
      %v829 = vpop.permute.xlu0 %828
      %830 = vrot.lane.b32.xlu0 %v827, 16
      %v831 = vpop.permute.xlu0 %830
      %vm832 = vcmask 130048
      %v833 = vsel %vm832, %v829, %v831
      %v837 = vmul.f32 %v699, %v829
      %v838 = vmul.f32 %v700, %v833
      %v839 = vmul.f32 %v735, %v831
      %v840 = vmul.f32 %v701, %v829
      %v841 = vmul.f32 %v702, %v833
      %v842 = vmul.f32 %v736, %v831
      %v843 = vmul.f32 %v703, %v829
      %v844 = vmul.f32 %v704, %v833
      %v845 = vmul.f32 %v737, %v831
      %v846 = vmul.f32 %v705, %v829
      %v847 = vmul.f32 %v706, %v833
      %v848 = vmul.f32 %v738, %v831
      %v849 = vmul.f32 %v707, %v829
      %v850 = vmul.f32 %v708, %v833
      %v851 = vmul.f32 %v739, %v831
      %v852 = vmul.f32 %v709, %v829
      %v853 = vmul.f32 %v710, %v833
      %v854 = vmul.f32 %v740, %v831
      %s855 = scalar_lea.vmem %s1, 5
      %v856 = vld [vmem:[%s855] ss:$8 sm:$0x3]
      %v858 = vlaneseq
      %v859 = vshrl.u32 %v858, 7
      %v860 = vsub.s32 0, %v859
      %v861 = vrot.slane %v856, %v860
      %v862 = vlaneseq
      %v863 = vshrl.u32 %v862, 7
      %v864 = vsub.s32 1, %v863
      %v865 = vrot.slane %v856, %v864
      %866 = vrot.lane.b32.xlu0 %v861, 18
      %v867 = vpop.permute.xlu0 %866
      %868 = vrot.lane.b32.xlu0 %v865, 18
      %v869 = vpop.permute.xlu0 %868
      %vm870 = vcmask 146432
      %v871 = vsel %vm870, %v867, %v869
      %v875 = vmul.f32 %v699, %v867
      %v876 = vmul.f32 %v700, %v871
      %v877 = vmul.f32 %v735, %v869
      %v878 = vmul.f32 %v701, %v867
      %v879 = vmul.f32 %v702, %v871
      %v880 = vmul.f32 %v736, %v869
      %v881 = vmul.f32 %v703, %v867
      %v882 = vmul.f32 %v704, %v871
      %v883 = vmul.f32 %v737, %v869
      %v884 = vmul.f32 %v705, %v867
      %v885 = vmul.f32 %v706, %v871
      %v886 = vmul.f32 %v738, %v869
      %v887 = vmul.f32 %v707, %v867
      %v888 = vmul.f32 %v708, %v871
      %v889 = vmul.f32 %v739, %v869
      %v890 = vmul.f32 %v709, %v867
      %v891 = vmul.f32 %v710, %v871
      %v892 = vmul.f32 %v740, %v869
      %s893 = scalar_lea.vmem %s1, 6
      %v894 = vld [vmem:[%s893] ss:$8 sm:$0x3]
      %v896 = vlaneseq
      %v897 = vshrl.u32 %v896, 7
      %v898 = vsub.s32 0, %v897
      %v899 = vrot.slane %v894, %v898
      %v900 = vlaneseq
      %v901 = vshrl.u32 %v900, 7
      %v902 = vsub.s32 1, %v901
      %v903 = vrot.slane %v894, %v902
      %904 = vrot.lane.b32.xlu0 %v899, 32
      %v905 = vpop.permute.xlu0 %904
      %906 = vrot.lane.b32.xlu0 %v903, 32
      %v907 = vpop.permute.xlu0 %906
      %vm908 = vcmask 261120
      %v909 = vsel %vm908, %v905, %v907
      %v913 = vmul.f32 %v699, %v905
      %v914 = vmul.f32 %v700, %v909
      %v915 = vmul.f32 %v735, %v907
      %v916 = vmul.f32 %v701, %v905
      %v917 = vmul.f32 %v702, %v909
      %v918 = vmul.f32 %v736, %v907
      %v919 = vmul.f32 %v703, %v905
      %v920 = vmul.f32 %v704, %v909
      %v921 = vmul.f32 %v737, %v907
      %v922 = vmul.f32 %v705, %v905
      %v923 = vmul.f32 %v706, %v909
      %v924 = vmul.f32 %v738, %v907
      %v925 = vmul.f32 %v707, %v905
      %v926 = vmul.f32 %v708, %v909
      %v927 = vmul.f32 %v739, %v907
      %v928 = vmul.f32 %v709, %v905
      %v929 = vmul.f32 %v710, %v909
      %v930 = vmul.f32 %v740, %v907
      %s931 = scalar_lea.vmem %s1, 7
      %v932 = vld [vmem:[%s931] ss:$8 sm:$0x3]
      %v934 = vlaneseq
      %v935 = vshrl.u32 %v934, 7
      %v936 = vsub.s32 0, %v935
      %v937 = vrot.slane %v932, %v936
      %v938 = vlaneseq
      %v939 = vshrl.u32 %v938, 7
      %v940 = vsub.s32 1, %v939
      %v941 = vrot.slane %v932, %v940
      %942 = vrot.lane.b32.xlu0 %v937, 33
      %v943 = vpop.permute.xlu0 %942
      %944 = vrot.lane.b32.xlu0 %v941, 33
      %v945 = vpop.permute.xlu0 %944
      %vm946 = vcmask 269312
      %v947 = vsel %vm946, %v943, %v945
      %v951 = vmul.f32 %v699, %v943
      %v952 = vmul.f32 %v700, %v947
      %v953 = vmul.f32 %v735, %v945
      %v954 = vmul.f32 %v701, %v943
      %v955 = vmul.f32 %v702, %v947
      %v956 = vmul.f32 %v736, %v945
      %v957 = vmul.f32 %v703, %v943
      %v958 = vmul.f32 %v704, %v947
      %v959 = vmul.f32 %v737, %v945
      %v960 = vmul.f32 %v705, %v943
      %v961 = vmul.f32 %v706, %v947
      %v962 = vmul.f32 %v738, %v945
      %v963 = vmul.f32 %v707, %v943
      %v964 = vmul.f32 %v708, %v947
      %v965 = vmul.f32 %v739, %v945
      %v966 = vmul.f32 %v709, %v943
      %v967 = vmul.f32 %v710, %v947
      %v968 = vmul.f32 %v740, %v945
      %s969 = scalar_lea.vmem %s1, 16
      %v970 = vld [vmem:[%s969] ss:$8 sm:$0x3]
      %v972 = vlaneseq
      %v973 = vshrl.u32 %v972, 7
      %v974 = vsub.s32 0, %v973
      %v975 = vrot.slane %v970, %v974
      %v976 = vlaneseq
      %v977 = vshrl.u32 %v976, 7
      %v978 = vsub.s32 1, %v977
      %v979 = vrot.slane %v970, %v978
      %980 = vrot.lane.b32.xlu0 %v975, 34
      %v981 = vpop.permute.xlu0 %980
      %982 = vrot.lane.b32.xlu0 %v979, 34
      %v983 = vpop.permute.xlu0 %982
      %v984 = vsel %vm602, %v981, %v983
      %v988 = vmul.f32 %v699, %v981
      %v989 = vmul.f32 %v700, %v984
      %v990 = vmul.f32 %v735, %v983
      %v991 = vmul.f32 %v701, %v981
      %v992 = vmul.f32 %v702, %v984
      %v993 = vmul.f32 %v736, %v983
      %v994 = vmul.f32 %v703, %v981
      %v995 = vmul.f32 %v704, %v984
      %v996 = vmul.f32 %v737, %v983
      %v997 = vmul.f32 %v705, %v981
      %v998 = vmul.f32 %v706, %v984
      %v999 = vmul.f32 %v738, %v983
      %v1000 = vmul.f32 %v707, %v981
      %v1001 = vmul.f32 %v708, %v984
      %v1002 = vmul.f32 %v739, %v983
      %v1003 = vmul.f32 %v709, %v981
      %v1004 = vmul.f32 %v710, %v984
      %v1005 = vmul.f32 %v740, %v983
      %1024 = vrot.lane.b32.xlu0 %v761, 127
      %v1025 = vpop.permute.xlu0 %1024
      %1026 = vrot.lane.b32.xlu0 %v762, 127
      %v1027 = vpop.permute.xlu0 %1026
      %1028 = vrot.lane.b32.xlu0 %v763, 127
      %v1029 = vpop.permute.xlu0 %1028
      %1030 = vrot.lane.b32.xlu0 %v764, 127
      %v1031 = vpop.permute.xlu0 %1030
      %1032 = vrot.lane.b32.xlu0 %v765, 127
      %v1033 = vpop.permute.xlu0 %1032
      %1034 = vrot.lane.b32.xlu0 %v766, 127
      %v1035 = vpop.permute.xlu0 %1034
      %1036 = vrot.lane.b32.xlu0 %v767, 127
      %v1037 = vpop.permute.xlu0 %1036
      %1038 = vrot.lane.b32.xlu0 %v768, 127
      %v1039 = vpop.permute.xlu0 %1038
      %1040 = vrot.lane.b32.xlu0 %v769, 127
      %v1041 = vpop.permute.xlu0 %1040
      %1042 = vrot.lane.b32.xlu0 %v770, 127
      %v1043 = vpop.permute.xlu0 %1042
      %1044 = vrot.lane.b32.xlu0 %v771, 127
      %v1045 = vpop.permute.xlu0 %1044
      %1046 = vrot.lane.b32.xlu0 %v772, 127
      %v1047 = vpop.permute.xlu0 %1046
      %1048 = vrot.lane.b32.xlu0 %v773, 127
      %v1049 = vpop.permute.xlu0 %1048
      %1050 = vrot.lane.b32.xlu0 %v774, 127
      %v1051 = vpop.permute.xlu0 %1050
      %1052 = vrot.lane.b32.xlu0 %v775, 127
      %v1053 = vpop.permute.xlu0 %1052
      %1054 = vrot.lane.b32.xlu0 %v776, 127
      %v1055 = vpop.permute.xlu0 %1054
      %1056 = vrot.lane.b32.xlu0 %v777, 127
      %v1057 = vpop.permute.xlu0 %1056
      %1058 = vrot.lane.b32.xlu0 %v778, 127
      %v1059 = vpop.permute.xlu0 %1058
      %vm1060 = vcmask 1039360
      %v1061 = vsel %vm1060, %v1025, %v1027
      %v1062 = vsel %vm1060, %v1027, %v1029
      %v1063 = vsel %vm1060, %v1031, %v1033
      %v1064 = vsel %vm1060, %v1033, %v1035
      %v1065 = vsel %vm1060, %v1037, %v1039
      %v1066 = vsel %vm1060, %v1039, %v1041
      %v1067 = vsel %vm1060, %v1043, %v1045
      %v1068 = vsel %vm1060, %v1045, %v1047
      %v1069 = vsel %vm1060, %v1049, %v1051
      %v1070 = vsel %vm1060, %v1051, %v1053
      %v1071 = vsel %vm1060, %v1055, %v1057
      %v1072 = vsel %vm1060, %v1057, %v1059
      %1103 = vrot.lane.b32.xlu0 %v799, 126
      %v1104 = vpop.permute.xlu0 %1103
      %1105 = vrot.lane.b32.xlu0 %v800, 126
      %v1106 = vpop.permute.xlu0 %1105
      %1107 = vrot.lane.b32.xlu0 %v801, 126
      %v1108 = vpop.permute.xlu0 %1107
      %1109 = vrot.lane.b32.xlu0 %v802, 126
      %v1110 = vpop.permute.xlu0 %1109
      %1111 = vrot.lane.b32.xlu0 %v803, 126
      %v1112 = vpop.permute.xlu0 %1111
      %1113 = vrot.lane.b32.xlu0 %v804, 126
      %v1114 = vpop.permute.xlu0 %1113
      %1115 = vrot.lane.b32.xlu0 %v805, 126
      %v1116 = vpop.permute.xlu0 %1115
      %1117 = vrot.lane.b32.xlu0 %v806, 126
      %v1118 = vpop.permute.xlu0 %1117
      %1119 = vrot.lane.b32.xlu0 %v807, 126
      %v1120 = vpop.permute.xlu0 %1119
      %1121 = vrot.lane.b32.xlu0 %v808, 126
      %v1122 = vpop.permute.xlu0 %1121
      %1123 = vrot.lane.b32.xlu0 %v809, 126
      %v1124 = vpop.permute.xlu0 %1123
      %1125 = vrot.lane.b32.xlu0 %v810, 126
      %v1126 = vpop.permute.xlu0 %1125
      %1127 = vrot.lane.b32.xlu0 %v811, 126
      %v1128 = vpop.permute.xlu0 %1127
      %1129 = vrot.lane.b32.xlu0 %v812, 126
      %v1130 = vpop.permute.xlu0 %1129
      %1131 = vrot.lane.b32.xlu0 %v813, 126
      %v1132 = vpop.permute.xlu0 %1131
      %1133 = vrot.lane.b32.xlu0 %v814, 126
      %v1134 = vpop.permute.xlu0 %1133
      %1135 = vrot.lane.b32.xlu0 %v815, 126
      %v1136 = vpop.permute.xlu0 %1135
      %1137 = vrot.lane.b32.xlu0 %v816, 126
      %v1138 = vpop.permute.xlu0 %1137
      %vm1139 = vcmask 1031168
      %v1140 = vsel %vm1139, %v1104, %v1106
      %v1141 = vsel %vm1139, %v1106, %v1108
      %v1142 = vsel %vm1139, %v1110, %v1112
      %v1143 = vsel %vm1139, %v1112, %v1114
      %v1144 = vsel %vm1139, %v1116, %v1118
      %v1145 = vsel %vm1139, %v1118, %v1120
      %v1146 = vsel %vm1139, %v1122, %v1124
      %v1147 = vsel %vm1139, %v1124, %v1126
      %v1148 = vsel %vm1139, %v1128, %v1130
      %v1149 = vsel %vm1139, %v1130, %v1132
      %v1150 = vsel %vm1139, %v1134, %v1136
      %v1151 = vsel %vm1139, %v1136, %v1138
      %1182 = vrot.lane.b32.xlu0 %v837, 112
      %v1183 = vpop.permute.xlu0 %1182
      %1184 = vrot.lane.b32.xlu0 %v838, 112
      %v1185 = vpop.permute.xlu0 %1184
      %1186 = vrot.lane.b32.xlu0 %v839, 112
      %v1187 = vpop.permute.xlu0 %1186
      %1188 = vrot.lane.b32.xlu0 %v840, 112
      %v1189 = vpop.permute.xlu0 %1188
      %1190 = vrot.lane.b32.xlu0 %v841, 112
      %v1191 = vpop.permute.xlu0 %1190
      %1192 = vrot.lane.b32.xlu0 %v842, 112
      %v1193 = vpop.permute.xlu0 %1192
      %1194 = vrot.lane.b32.xlu0 %v843, 112
      %v1195 = vpop.permute.xlu0 %1194
      %1196 = vrot.lane.b32.xlu0 %v844, 112
      %v1197 = vpop.permute.xlu0 %1196
      %1198 = vrot.lane.b32.xlu0 %v845, 112
      %v1199 = vpop.permute.xlu0 %1198
      %1200 = vrot.lane.b32.xlu0 %v846, 112
      %v1201 = vpop.permute.xlu0 %1200
      %1202 = vrot.lane.b32.xlu0 %v847, 112
      %v1203 = vpop.permute.xlu0 %1202
      %1204 = vrot.lane.b32.xlu0 %v848, 112
      %v1205 = vpop.permute.xlu0 %1204
      %1206 = vrot.lane.b32.xlu0 %v849, 112
      %v1207 = vpop.permute.xlu0 %1206
      %1208 = vrot.lane.b32.xlu0 %v850, 112
      %v1209 = vpop.permute.xlu0 %1208
      %1210 = vrot.lane.b32.xlu0 %v851, 112
      %v1211 = vpop.permute.xlu0 %1210
      %1212 = vrot.lane.b32.xlu0 %v852, 112
      %v1213 = vpop.permute.xlu0 %1212
      %1214 = vrot.lane.b32.xlu0 %v853, 112
      %v1215 = vpop.permute.xlu0 %1214
      %1216 = vrot.lane.b32.xlu0 %v854, 112
      %v1217 = vpop.permute.xlu0 %1216
      %vm1218 = vcmask 916480
      %v1219 = vsel %vm1218, %v1183, %v1185
      %v1220 = vsel %vm1218, %v1185, %v1187
      %v1221 = vsel %vm1218, %v1189, %v1191
      %v1222 = vsel %vm1218, %v1191, %v1193
      %v1223 = vsel %vm1218, %v1195, %v1197
      %v1224 = vsel %vm1218, %v1197, %v1199
      %v1225 = vsel %vm1218, %v1201, %v1203
      %v1226 = vsel %vm1218, %v1203, %v1205
      %v1227 = vsel %vm1218, %v1207, %v1209
      %v1228 = vsel %vm1218, %v1209, %v1211
      %v1229 = vsel %vm1218, %v1213, %v1215
      %v1230 = vsel %vm1218, %v1215, %v1217
      %1261 = vrot.lane.b32.xlu0 %v875, 110
      %v1262 = vpop.permute.xlu0 %1261
      %1263 = vrot.lane.b32.xlu0 %v876, 110
      %v1264 = vpop.permute.xlu0 %1263
      %1265 = vrot.lane.b32.xlu0 %v877, 110
      %v1266 = vpop.permute.xlu0 %1265
      %1267 = vrot.lane.b32.xlu0 %v878, 110
      %v1268 = vpop.permute.xlu0 %1267
      %1269 = vrot.lane.b32.xlu0 %v879, 110
      %v1270 = vpop.permute.xlu0 %1269
      %1271 = vrot.lane.b32.xlu0 %v880, 110
      %v1272 = vpop.permute.xlu0 %1271
      %1273 = vrot.lane.b32.xlu0 %v881, 110
      %v1274 = vpop.permute.xlu0 %1273
      %1275 = vrot.lane.b32.xlu0 %v882, 110
      %v1276 = vpop.permute.xlu0 %1275
      %1277 = vrot.lane.b32.xlu0 %v883, 110
      %v1278 = vpop.permute.xlu0 %1277
      %1279 = vrot.lane.b32.xlu0 %v884, 110
      %v1280 = vpop.permute.xlu0 %1279
      %1281 = vrot.lane.b32.xlu0 %v885, 110
      %v1282 = vpop.permute.xlu0 %1281
      %1283 = vrot.lane.b32.xlu0 %v886, 110
      %v1284 = vpop.permute.xlu0 %1283
      %1285 = vrot.lane.b32.xlu0 %v887, 110
      %v1286 = vpop.permute.xlu0 %1285
      %1287 = vrot.lane.b32.xlu0 %v888, 110
      %v1288 = vpop.permute.xlu0 %1287
      %1289 = vrot.lane.b32.xlu0 %v889, 110
      %v1290 = vpop.permute.xlu0 %1289
      %1291 = vrot.lane.b32.xlu0 %v890, 110
      %v1292 = vpop.permute.xlu0 %1291
      %1293 = vrot.lane.b32.xlu0 %v891, 110
      %v1294 = vpop.permute.xlu0 %1293
      %1295 = vrot.lane.b32.xlu0 %v892, 110
      %v1296 = vpop.permute.xlu0 %1295
      %vm1297 = vcmask 900096
      %v1298 = vsel %vm1297, %v1262, %v1264
      %v1299 = vsel %vm1297, %v1264, %v1266
      %v1300 = vsel %vm1297, %v1268, %v1270
      %v1301 = vsel %vm1297, %v1270, %v1272
      %v1302 = vsel %vm1297, %v1274, %v1276
      %v1303 = vsel %vm1297, %v1276, %v1278
      %v1304 = vsel %vm1297, %v1280, %v1282
      %v1305 = vsel %vm1297, %v1282, %v1284
      %v1306 = vsel %vm1297, %v1286, %v1288
      %v1307 = vsel %vm1297, %v1288, %v1290
      %v1308 = vsel %vm1297, %v1292, %v1294
      %v1309 = vsel %vm1297, %v1294, %v1296
      %1340 = vrot.lane.b32.xlu0 %v913, 96
      %v1341 = vpop.permute.xlu0 %1340
      %1342 = vrot.lane.b32.xlu0 %v914, 96
      %v1343 = vpop.permute.xlu0 %1342
      %1344 = vrot.lane.b32.xlu0 %v915, 96
      %v1345 = vpop.permute.xlu0 %1344
      %1346 = vrot.lane.b32.xlu0 %v916, 96
      %v1347 = vpop.permute.xlu0 %1346
      %1348 = vrot.lane.b32.xlu0 %v917, 96
      %v1349 = vpop.permute.xlu0 %1348
      %1350 = vrot.lane.b32.xlu0 %v918, 96
      %v1351 = vpop.permute.xlu0 %1350
      %1352 = vrot.lane.b32.xlu0 %v919, 96
      %v1353 = vpop.permute.xlu0 %1352
      %1354 = vrot.lane.b32.xlu0 %v920, 96
      %v1355 = vpop.permute.xlu0 %1354
      %1356 = vrot.lane.b32.xlu0 %v921, 96
      %v1357 = vpop.permute.xlu0 %1356
      %1358 = vrot.lane.b32.xlu0 %v922, 96
      %v1359 = vpop.permute.xlu0 %1358
      %1360 = vrot.lane.b32.xlu0 %v923, 96
      %v1361 = vpop.permute.xlu0 %1360
      %1362 = vrot.lane.b32.xlu0 %v924, 96
      %v1363 = vpop.permute.xlu0 %1362
      %1364 = vrot.lane.b32.xlu0 %v925, 96
      %v1365 = vpop.permute.xlu0 %1364
      %1366 = vrot.lane.b32.xlu0 %v926, 96
      %v1367 = vpop.permute.xlu0 %1366
      %1368 = vrot.lane.b32.xlu0 %v927, 96
      %v1369 = vpop.permute.xlu0 %1368
      %1370 = vrot.lane.b32.xlu0 %v928, 96
      %v1371 = vpop.permute.xlu0 %1370
      %1372 = vrot.lane.b32.xlu0 %v929, 96
      %v1373 = vpop.permute.xlu0 %1372
      %1374 = vrot.lane.b32.xlu0 %v930, 96
      %v1375 = vpop.permute.xlu0 %1374
      %vm1376 = vcmask 785408
      %v1377 = vsel %vm1376, %v1341, %v1343
      %v1378 = vsel %vm1376, %v1343, %v1345
      %v1379 = vsel %vm1376, %v1347, %v1349
      %v1380 = vsel %vm1376, %v1349, %v1351
      %v1381 = vsel %vm1376, %v1353, %v1355
      %v1382 = vsel %vm1376, %v1355, %v1357
      %v1383 = vsel %vm1376, %v1359, %v1361
      %v1384 = vsel %vm1376, %v1361, %v1363
      %v1385 = vsel %vm1376, %v1365, %v1367
      %v1386 = vsel %vm1376, %v1367, %v1369
      %v1387 = vsel %vm1376, %v1371, %v1373
      %v1388 = vsel %vm1376, %v1373, %v1375
      %1419 = vrot.lane.b32.xlu0 %v951, 95
      %v1420 = vpop.permute.xlu0 %1419
      %1421 = vrot.lane.b32.xlu0 %v952, 95
      %v1422 = vpop.permute.xlu0 %1421
      %1423 = vrot.lane.b32.xlu0 %v953, 95
      %v1424 = vpop.permute.xlu0 %1423
      %1425 = vrot.lane.b32.xlu0 %v954, 95
      %v1426 = vpop.permute.xlu0 %1425
      %1427 = vrot.lane.b32.xlu0 %v955, 95
      %v1428 = vpop.permute.xlu0 %1427
      %1429 = vrot.lane.b32.xlu0 %v956, 95
      %v1430 = vpop.permute.xlu0 %1429
      %1431 = vrot.lane.b32.xlu0 %v957, 95
      %v1432 = vpop.permute.xlu0 %1431
      %1433 = vrot.lane.b32.xlu0 %v958, 95
      %v1434 = vpop.permute.xlu0 %1433
      %1435 = vrot.lane.b32.xlu0 %v959, 95
      %v1436 = vpop.permute.xlu0 %1435
      %1437 = vrot.lane.b32.xlu0 %v960, 95
      %v1438 = vpop.permute.xlu0 %1437
      %1439 = vrot.lane.b32.xlu0 %v961, 95
      %v1440 = vpop.permute.xlu0 %1439
      %1441 = vrot.lane.b32.xlu0 %v962, 95
      %v1442 = vpop.permute.xlu0 %1441
      %1443 = vrot.lane.b32.xlu0 %v963, 95
      %v1444 = vpop.permute.xlu0 %1443
      %1445 = vrot.lane.b32.xlu0 %v964, 95
      %v1446 = vpop.permute.xlu0 %1445
      %1447 = vrot.lane.b32.xlu0 %v965, 95
      %v1448 = vpop.permute.xlu0 %1447
      %1449 = vrot.lane.b32.xlu0 %v966, 95
      %v1450 = vpop.permute.xlu0 %1449
      %1451 = vrot.lane.b32.xlu0 %v967, 95
      %v1452 = vpop.permute.xlu0 %1451
      %1453 = vrot.lane.b32.xlu0 %v968, 95
      %v1454 = vpop.permute.xlu0 %1453
      %vm1455 = vcmask 777216
      %v1456 = vsel %vm1455, %v1420, %v1422
      %v1457 = vsel %vm1455, %v1422, %v1424
      %v1458 = vsel %vm1455, %v1426, %v1428
      %v1459 = vsel %vm1455, %v1428, %v1430
      %v1460 = vsel %vm1455, %v1432, %v1434
      %v1461 = vsel %vm1455, %v1434, %v1436
      %v1462 = vsel %vm1455, %v1438, %v1440
      %v1463 = vsel %vm1455, %v1440, %v1442
      %v1464 = vsel %vm1455, %v1444, %v1446
      %v1465 = vsel %vm1455, %v1446, %v1448
      %v1466 = vsel %vm1455, %v1450, %v1452
      %v1467 = vsel %vm1455, %v1452, %v1454
      %1498 = vrot.lane.b32.xlu0 %v988, 94
      %v1499 = vpop.permute.xlu0 %1498
      %1500 = vrot.lane.b32.xlu0 %v989, 94
      %v1501 = vpop.permute.xlu0 %1500
      %1502 = vrot.lane.b32.xlu0 %v990, 94
      %v1503 = vpop.permute.xlu0 %1502
      %1504 = vrot.lane.b32.xlu0 %v991, 94
      %v1505 = vpop.permute.xlu0 %1504
      %1506 = vrot.lane.b32.xlu0 %v992, 94
      %v1507 = vpop.permute.xlu0 %1506
      %1508 = vrot.lane.b32.xlu0 %v993, 94
      %v1509 = vpop.permute.xlu0 %1508
      %1510 = vrot.lane.b32.xlu0 %v994, 94
      %v1511 = vpop.permute.xlu0 %1510
      %1512 = vrot.lane.b32.xlu0 %v995, 94
      %v1513 = vpop.permute.xlu0 %1512
      %1514 = vrot.lane.b32.xlu0 %v996, 94
      %v1515 = vpop.permute.xlu0 %1514
      %1516 = vrot.lane.b32.xlu0 %v997, 94
      %v1517 = vpop.permute.xlu0 %1516
      %1518 = vrot.lane.b32.xlu0 %v998, 94
      %v1519 = vpop.permute.xlu0 %1518
      %1520 = vrot.lane.b32.xlu0 %v999, 94
      %v1521 = vpop.permute.xlu0 %1520
      %1522 = vrot.lane.b32.xlu0 %v1000, 94
      %v1523 = vpop.permute.xlu0 %1522
      %1524 = vrot.lane.b32.xlu0 %v1001, 94
      %v1525 = vpop.permute.xlu0 %1524
      %1526 = vrot.lane.b32.xlu0 %v1002, 94
      %v1527 = vpop.permute.xlu0 %1526
      %1528 = vrot.lane.b32.xlu0 %v1003, 94
      %v1529 = vpop.permute.xlu0 %1528
      %1530 = vrot.lane.b32.xlu0 %v1004, 94
      %v1531 = vpop.permute.xlu0 %1530
      %1532 = vrot.lane.b32.xlu0 %v1005, 94
      %v1533 = vpop.permute.xlu0 %1532
      %vm1534 = vcmask 769024
      %v1535 = vsel %vm1534, %v1499, %v1501
      %v1536 = vsel %vm1534, %v1501, %v1503
      %v1537 = vsel %vm1534, %v1505, %v1507
      %v1538 = vsel %vm1534, %v1507, %v1509
      %v1539 = vsel %vm1534, %v1511, %v1513
      %v1540 = vsel %vm1534, %v1513, %v1515
      %v1541 = vsel %vm1534, %v1517, %v1519
      %v1542 = vsel %vm1534, %v1519, %v1521
      %v1543 = vsel %vm1534, %v1523, %v1525
      %v1544 = vsel %vm1534, %v1525, %v1527
      %v1545 = vsel %vm1534, %v1529, %v1531
      %v1546 = vsel %vm1534, %v1531, %v1533
      %v1559 = vld [vmem:[%s7] sm:$0xff]
      %v1560 = vld [vmem:[%s7 + $0x8] sm:$0xff]
      %v1561 = vld [vmem:[%s7 + $0x10] sm:$0xff]
      %v1562 = vld [vmem:[%s7 + $0x18] sm:$0xff]
      %v1563 = vld [vmem:[%s7 + $0x20] sm:$0xf]
      %v1564 = vld [vmem:[%s7 + $0x28] sm:$0xf]
      %v1565 = vld [vmem:[%s7 + $0x30] sm:$0xf]
      %v1566 = vld [vmem:[%s7 + $0x38] sm:$0xf]
      %vm1567 = vcmask 392192
      %v1569 = vsel %vm1567, %v1562, 0
      %v1572 = vsel %vm1567, %v1566, 0
      %1574 = vmatprep.subr.mxu0 %v1147
      %1575 = vmatpush1.msra.mxu0 %v1146
      %1576 = vmatprep.subr.mxu0 %v1145
      %1577 = vmatpush1.msra.mxu0 %v1144
      %1578 = vmatprep.subr.mxu0 %v1143
      %1579 = vmatpush1.msra.mxu0 %v1142
      %1580 = vmatprep.subr.mxu0 %v1141
      %1581 = vmatpush1.msra.mxu0 %v1140
      %1582 = vmatprep.subr.mxu0 %v1072
      %1583 = vmatpush1.msra.mxu0 %v1071
      %1584 = vmatprep.subr.mxu0 %v1070
      %1585 = vmatpush1.msra.mxu0 %v1069
      %1586 = vmatprep.subr.mxu0 %v1068
      %1587 = vmatpush1.msra.mxu0 %v1067
      %1588 = vmatprep.subr.mxu0 %v1066
      %1589 = vmatpush1.msra.mxu0 %v1065
      %1590 = vmatprep.subr.mxu0 %v1064
      %1591 = vmatpush1.msra.mxu0 %v1063
      %1592 = vmatprep.subr.mxu0 %v1062
      %1593 = vmatpush1.msra.mxu0 %v1061
      %1594 = vmatprep.subr.mxu0 %v734
      %1595 = vmatpush1.msra.mxu0 %v733
      %1596 = vmatprep.subr.mxu0 %v732
      %1597 = vmatpush1.msra.mxu0 %v731
      %1598 = vmatprep.subr.mxu0 %v730
      %1599 = vmatpush1.msra.mxu0 %v729
      %1600 = vmatprep.subr.mxu0 %v728
      %1601 = vmatpush1.msra.mxu0 %v727
      %1602 = vmatprep.subr.mxu0 %v726
      %1603 = vmatpush1.msra.mxu0 %v725
      %1604 = vmatprep.subr.mxu0 %v724
      %1605 = vmatpush1.msra.mxu0 %v723
      %1606 = vmatprep.subr.mxu0 %v1301
      %1607 = vmatpush2.msra.mxu0 %v1300
      %1608 = vmatprep.subr.mxu0 %v1299
      %1609 = vmatpush2.msra.mxu0 %v1298
      %1610 = vmatprep.subr.mxu0 %v599
      %1611 = vmatpush2.msra.mxu0 %v598
      %1612 = vmatprep.subr.mxu0 %v597
      %1613 = vmatpush2.msra.mxu0 %v596
      %1614 = vmatprep.subr.mxu0 %v595
      %1615 = vmatpush2.msra.mxu0 %v594
      %1616 = vmatprep.subr.mxu0 %v593
      %1617 = vmatpush2.msra.mxu0 %v592
      %1618 = vmatprep.subr.mxu0 %v591
      %1619 = vmatpush2.msra.mxu0 %v590
      %1620 = vmatprep.subr.mxu0 %v589
      %1621 = vmatpush2.msra.mxu0 %v588
      %1622 = vmatprep.subr.mxu0 %v1230
      %1623 = vmatpush2.msra.mxu0 %v1229
      %1624 = vmatprep.subr.mxu0 %v1228
      %1625 = vmatpush2.msra.mxu0 %v1227
      %1626 = vmatprep.subr.mxu0 %v1226
      %1627 = vmatpush2.msra.mxu0 %v1225
      %1628 = vmatprep.subr.mxu0 %v1224
      %1629 = vmatpush2.msra.mxu0 %v1223
      %1630 = vmatprep.subr.mxu0 %v1222
      %1631 = vmatpush2.msra.mxu0 %v1221
      %1632 = vmatprep.subr.mxu0 %v1220
      %1633 = vmatpush2.msra.mxu0 %v1219
      %1634 = vmatprep.subr.mxu0 %v1151
      %1635 = vmatpush2.msra.mxu0 %v1150
      %1636 = vmatprep.subr.mxu0 %v1149
      %1637 = vmatpush2.msra.mxu0 %v1148
      %1638 = vmatprep.mubr.f32.mxu0 %v1560
      %1639 = vmatmul.mubr.f32.gmra.mxu0 %v1559
      %v1640 = vpop.f32.mrf.mxu0
      %v1641 = vadd.f32 0.0, %v1640
      %v1642 = vpop.f32.mrf.mxu0
      %v1643 = vadd.f32 0.0, %v1642
      %1644 = vmatprep.mubr.f32.mxu0 %v1564
      %1645 = vmatmul.mubr.f32.gmra.mxu0 %v1563
      %v1646 = vpop.f32.mrf.mxu0
      %v1647 = vadd.f32 0.0, %v1646
      %v1648 = vpop.f32.mrf.mxu0
      %v1649 = vadd.f32 0.0, %v1648
      %1650 = vdwg.mxu0
      %1651 = vmatprep.subr.mxu0 %v1467
      %1652 = vmatpush1.msra.mxu0 %v1466
      %1653 = vmatprep.subr.mxu0 %v1465
      %1654 = vmatpush1.msra.mxu0 %v1464
      %1655 = vmatprep.subr.mxu0 %v1463
      %1656 = vmatpush1.msra.mxu0 %v1462
      %1657 = vmatprep.subr.mxu0 %v1461
      %1658 = vmatpush1.msra.mxu0 %v1460
      %1659 = vmatprep.subr.mxu0 %v1459
      %1660 = vmatpush1.msra.mxu0 %v1458
      %1661 = vmatprep.subr.mxu0 %v1457
      %1662 = vmatpush1.msra.mxu0 %v1456
      %1663 = vmatprep.subr.mxu0 %v1388
      %1664 = vmatpush1.msra.mxu0 %v1387
      %1665 = vmatprep.subr.mxu0 %v1386
      %1666 = vmatpush1.msra.mxu0 %v1385
      %1667 = vmatprep.subr.mxu0 %v1384
      %1668 = vmatpush1.msra.mxu0 %v1383
      %1669 = vmatprep.subr.mxu0 %v1382
      %1670 = vmatpush1.msra.mxu0 %v1381
      %1671 = vmatprep.subr.mxu0 %v1380
      %1672 = vmatpush1.msra.mxu0 %v1379
      %1673 = vmatprep.subr.mxu0 %v1378
      %1674 = vmatpush1.msra.mxu0 %v1377
      %1675 = vmatprep.subr.mxu0 %v1309
      %1676 = vmatpush1.msra.mxu0 %v1308
      %1677 = vmatprep.subr.mxu0 %v1307
      %1678 = vmatpush1.msra.mxu0 %v1306
      %1679 = vmatprep.subr.mxu0 %v1305
      %1680 = vmatpush1.msra.mxu0 %v1304
      %1681 = vmatprep.subr.mxu0 %v1303
      %1682 = vmatpush1.msra.mxu0 %v1302
      %1683 = vmatprep.subr.mxu0 0.0
      %1684 = vmatpush2.msra.mxu0 0.0
      %1685 = vmatprep.subr.mxu0 0.0
      %1686 = vmatpush2.msra.mxu0 0.0
      %1687 = vmatprep.subr.mxu0 0.0
      %1688 = vmatpush2.msra.mxu0 0.0
      %1689 = vmatprep.subr.mxu0 0.0
      %1690 = vmatpush2.msra.mxu0 0.0
      %1691 = vmatprep.subr.mxu0 0.0
      %1692 = vmatpush2.msra.mxu0 0.0
      %1693 = vmatprep.subr.mxu0 0.0
      %1694 = vmatpush2.msra.mxu0 0.0
      %1695 = vmatprep.subr.mxu0 0.0
      %1696 = vmatpush2.msra.mxu0 0.0
      %1697 = vmatprep.subr.mxu0 0.0
      %1698 = vmatpush2.msra.mxu0 0.0
      %1699 = vmatprep.subr.mxu0 0.0
      %1700 = vmatpush2.msra.mxu0 0.0
      %1701 = vmatprep.subr.mxu0 0.0
      %1702 = vmatpush2.msra.mxu0 0.0
      %1703 = vmatprep.subr.mxu0 %v1546
      %1704 = vmatpush2.msra.mxu0 %v1545
      %1705 = vmatprep.subr.mxu0 %v1544
      %1706 = vmatpush2.msra.mxu0 %v1543
      %1707 = vmatprep.subr.mxu0 %v1542
      %1708 = vmatpush2.msra.mxu0 %v1541
      %1709 = vmatprep.subr.mxu0 %v1540
      %1710 = vmatpush2.msra.mxu0 %v1539
      %1711 = vmatprep.subr.mxu0 %v1538
      %1712 = vmatpush2.msra.mxu0 %v1537
      %1713 = vmatprep.subr.mxu0 %v1536
      %1714 = vmatpush2.msra.mxu0 %v1535
      %1715 = vmatprep.mubr.f32.mxu0 %v1569
      %1716 = vmatmul.mubr.f32.gmra.mxu0 %v1561
      %v1717 = vpop.f32.mrf.mxu0
      %v1718 = vadd.f32 %v1641, %v1717
      %v1719 = vpop.f32.mrf.mxu0
      %v1720 = vadd.f32 %v1643, %v1719
      %1721 = vmatprep.mubr.f32.mxu0 %v1572
      %1722 = vmatmul.mubr.f32.gmra.mxu0 %v1565
      %v1723 = vpop.f32.mrf.mxu0
      %v1724 = vadd.f32 %v1647, %v1723
      %v1725 = vpop.f32.mrf.mxu0
      %v1726 = vadd.f32 %v1649, %v1725
      %1727 = vdwg.mxu0
      %1728 = vst [vmem:[%s305] sm:$0xff] %v1718
      %1729 = vst [vmem:[%s305 + $0x8] sm:$0xff] %v1720
      %1730 = vst [vmem:[%s305 + $0x10] sm:$0xf] %v1724
      %1731 = vst [vmem:[%s305 + $0x18] sm:$0xf] %v1726
      %vm1738 = vcmask 1043456
      %v1739 = vrot.slane %v306, 4
      %v1740 = vrot.slane %v307, 4
      %v1741 = vrot.slane %v308, 4
      %v1742 = vsel %vm1738, %v1739, %v1741
      %v1743 = vrot.slane %v309, 4
      %v1744 = vsel %vm1738, %v1740, %v1743
      %v1745 = vrot.slane %v310, 4
      %v1746 = vsel %vm1738, %v1741, %v1745
      %v1747 = vrot.slane %v311, 4
      %v1748 = vsel %vm1738, %v1743, %v1747
      %1757 = vst [vmem:[%s305 + $0x10] sm:$0xf0] %v1739
      %1758 = vst [vmem:[%s305 + $0x18] sm:$0xf0] %v1740
      %1759 = vst [vmem:[%s305 + $0x20] sm:$0xff] %v1742
      %1760 = vst [vmem:[%s305 + $0x28] sm:$0xff] %v1744
      %1761 = vst [vmem:[%s305 + $0x30] sm:$0xff] %v1746
      %1762 = vst [vmem:[%s305 + $0x38] sm:$0xff] %v1748
      %1763 = vst [vmem:[%s305 + $0x40] sm:$0xf] %v1745
      %1764 = vst [vmem:[%s305 + $0x48] sm:$0xf] %v1747
      %p1765 = scmp.lt.s32.totalorder %s19, 1
      %s1766 = scalar_select %p1765, %s19, 1
      %s1767 = smul.addr %s1766, 10
      %s1768 = smul.addr %s1767, 8
      %s1769 = scalar_lea.vmem %s8, %s1768
      // Predicated region
      $region53: #{bottleneck_forward.1} parent=51 // pred_check
        %p1770 = pneg %p210
      $region54: #{bottleneck_forward.1} parent=51 // pred_check_branch
        %1772 = sbr.rel (%p1770) target = $region56
      $region55: #{bottleneck_forward.1} parent=51 // pred_region
        _
      $region56: #{bottleneck_forward.1} parent=51 // pred_fallthru
        _
    $region52: #{bottleneck_forward.1} parent=5 // pred_fallthru
      _
    %p1773 = scmp.le.s32.totalorder 2, %s14
    // Predicated region
    $region57: #{bottleneck_forward.1} parent=5 // pred_check
      %p1774 = pneg %p1773
    $region58: #{bottleneck_forward.1} parent=5 // pred_check_branch
      %1776 = sbr.rel (%p1774) target = $region60
    $region59: #{bottleneck_forward.1} parent=5 // pred_region
      %s1777 = ssub.s32 %s14, 2
      // Predicated region
      $region61: #{bottleneck_forward.1} parent=59 // pred_check
        %p1778 = pneg %p216
      $region62: #{bottleneck_forward.1} parent=59 // pred_check_branch
        %1780 = sbr.rel (%p1778) target = $region64
      $region63: #{bottleneck_forward.1} parent=59 // pred_region
        %p1781 = scmp.lt.s32.totalorder %s20, 1
        %s1782 = scalar_select %p1781, %s20, 1
        %s1783 = smul.addr %s1782, 10
        %s1784 = smul.addr %s1783, 8
        %s1785 = scalar_lea.vmem %s8, %s1784
      $region64: #{bottleneck_forward.1} parent=59 // pred_fallthru
        _
    $region60: #{bottleneck_forward.1} parent=5 // pred_fallthru
      _
  $region6: #{bottleneck_forward.1} parent=0 // loop_footer
    %s18 = sadd.s32 1, %s14
  $region7: #{bottleneck_forward.1} parent=0 // loop_footer_branch
    %13 = sbr.rel target = $region3
  $region8: #{bottleneck_forward.1} parent=0 // loop_exit
    _

</llo_original>
